<compile_context>
chip_gen: v5e
topology: v5e:2x2
jax: 0.10.0
libtpu: 0.0.40
codegen_flags: <defaults>
</compile_context>

<pallas_src>
import numpy as np
import jax
import jax.numpy as jnp
from jax.experimental import pallas as pl
from jax.experimental.pallas import tpu as pltpu


# --------------------------------------------------------------------------------------
# Kernel
# --------------------------------------------------------------------------------------
def _dense_layer_kernel(x_ref, w_exp_ref, cvec_ref, mask_ref, w_shr_ref, b_shr_ref,
                        out_ref, scr_ref):
    nb, H, W, Cin = x_ref.shape
    C = cvec_ref.shape[1]
    G = w_shr_ref.shape[1]
    M = nb * H * W                       # flattened pixel count handled this grid step

    cvec = cvec_ref[...]                 # (11, C): rows 0..8 = dw taps, 9 = b_exp, 10 = b_dw
    mask = mask_ref[...]                 # (M, 4) 0/1 f32 boundary masks
    ml, mr = mask[:, 0:1], mask[:, 1:2]  # left / right neighbour valid
    mu, md = mask[:, 2:3], mask[:, 3:4]  # upper / lower neighbour valid

    # ---- 1x1 expand conv (MXU) + folded BN bias + ReLU6 ----
    x2 = x_ref[...].astype(jnp.float32).reshape(M, Cin)
    t = jnp.dot(x2, w_exp_ref[...], preferred_element_type=jnp.float32)
    t = jnp.clip(t + cvec[9:10], 0.0, 6.0)                     # (M, C)

    # ---- 3x3 depthwise conv (padding=1, groups=C) + folded BN bias + ReLU6 ----
    # With pixels flattened as r = (n*H + h)*W + w, spatial neighbours are sublane
    # shifts of +-1 (columns) and +-W (rows).  Stage t once (aligned, offset W) in a
    # scratch with W zero rows of padding on each side; boundary wrap-around (and
    # cross-image bleed when nb > 1) is removed by the 0/1 masks.
    zpad = jnp.zeros((W, C), jnp.float32)
    scr_ref[0:W, :] = zpad
    scr_ref[W + M:2 * W + M, :] = zpad
    scr_ref[W:W + M, :] = t                                    # aligned store

    tl = scr_ref[W - 1:W - 1 + M, :] * ml                      # t[h, w-1]
    tr = scr_ref[W + 1:W + 1 + M, :] * mr                      # t[h, w+1]

    row_up = tl * cvec[0:1] + t * cvec[1:2] + tr * cvec[2:3]   # dy = 0 taps
    acc    = tl * cvec[3:4] + t * cvec[4:5] + tr * cvec[5:6]   # dy = 1 taps
    row_dn = tl * cvec[6:7] + t * cvec[7:8] + tr * cvec[8:9]   # dy = 2 taps

    scr_ref[W:W + M, :] = row_up                               # reuse staging buffer
    acc = acc + mu * scr_ref[0:M, :]                           # contribution of row h-1
    scr_ref[W:W + M, :] = row_dn
    acc = acc + md * scr_ref[2 * W:2 * W + M, :]               # contribution of row h+1

    acc = jnp.clip(acc + cvec[10:11], 0.0, 6.0)                # (M, C)

    # ---- 1x1 shrink conv (MXU, bf16 operands / f32 accumulate) + ReLU6 ----
    o = jnp.dot(acc.astype(jnp.bfloat16), w_shr_ref[...],
                preferred_element_type=jnp.float32)
    o = jnp.clip(o + b_shr_ref[...], 0.0, 6.0)                 # (M, G)
    out_ref[...] = o.reshape(nb, H, W, G).astype(out_ref.dtype)


# --------------------------------------------------------------------------------------
# Wrapper
# --------------------------------------------------------------------------------------
def _pick_batch_block(N, H, W, C, budget_bytes=8 << 20):
    """Biggest per-step batch block that keeps the grid >= 2 (v7x megacore) and the
    ~10 live f32 copies of the (nb*H*W, C) expanded activation under a VMEM budget."""
    per_image = H * W * C * 4 * 10
    cap = max(1, budget_bytes // max(per_image, 1))
    best = 1
    for nb in range(1, N + 1):
        if N % nb == 0 and nb <= cap and N // nb >= 2:
            best = nb
    return best


def _dw_boundary_mask(nb, H, W):
    """(nb*H*W, 4) f32 masks: columns = [w>=1, w<=W-2, h>=1, h<=H-2]."""
    h = np.arange(H).reshape(H, 1)
    w = np.arange(W).reshape(1, W)
    m = np.stack([
        np.broadcast_to(w >= 1, (H, W)),
        np.broadcast_to(w <= W - 2, (H, W)),
        np.broadcast_to(h >= 1, (H, W)),
        np.broadcast_to(h <= H - 2, (H, W)),
    ], axis=-1).astype(np.float32)                       # (H, W, 4)
    return jnp.asarray(np.tile(m.reshape(H * W, 4), (nb, 1)))


def new_features_pallas(x_nhwc, fp, *, batch_block=None):
    """Runs the NewFeatures bottleneck; returns new features in NHWC."""
    N, H, W, Cin = x_nhwc.shape
    C = fp["cvec"].shape[1]
    G = fp["w_shr"].shape[1]
    if W % 8 != 0:
        raise ValueError("W must be a multiple of 8 so the (nb,H,W,C)<->(nb*H*W,C) "
                         "reshapes stay layout-compatible (sublane collapse only).")

    nb = batch_block if batch_block is not None else _pick_batch_block(N, H, W, C)
    assert N % nb == 0
    M = nb * H * W
    dwmask = _dw_boundary_mask(nb, H, W)

    in_specs = [
        pl.BlockSpec((nb, H, W, Cin), lambda n: (n, 0, 0, 0)),
        pl.BlockSpec((Cin, C), lambda n: (0, 0)),
        pl.BlockSpec((11, C), lambda n: (0, 0)),
        pl.BlockSpec((M, 4), lambda n: (0, 0)),
        pl.BlockSpec((C, G), lambda n: (0, 0)),
        pl.BlockSpec((1, G), lambda n: (0, 0)),
    ]
    out_specs = pl.BlockSpec((nb, H, W, G), lambda n: (n, 0, 0, 0))

    fn = pl.pallas_call(
        _dense_layer_kernel,
        out_shape=jax.ShapeDtypeStruct((N, H, W, G), x_nhwc.dtype),
        grid_spec=pltpu.PrefetchScalarGridSpec(
            num_scalar_prefetch=0,
            grid=(N // nb,),
            in_specs=in_specs,
            out_specs=out_specs,
            # Flat (M + 2W, C) staging buffer for the depthwise shifts.
            scratch_shapes=[pltpu.VMEM((M + 2 * W, C), jnp.float32)],
        ),
        compiler_params=pltpu.CompilerParams(
            dimension_semantics=("parallel",),
            # Explicit VMEM budget (also covers v5e's 16 MiB scoped default); the
            # per-step footprint here is << 2 MiB.
            vmem_limit_bytes=32 * 1024 * 1024,
        ),
    )
    return fn(x_nhwc, fp["w_exp"], fp["cvec"], dwmask, fp["w_shr"], fp["b_shr"])


def dense_layer_forward_nhwc(x_nhwc, fp):
    """Channels-last DenseLayer: cat([x, NewFeatures(x)]) along the channel (lane) axis."""
    return jnp.concatenate([x_nhwc, new_features_pallas(x_nhwc, fp)], axis=-1)


@jax.jit
def dense_layer_forward(x_nchw, fp):
    """PyTorch-layout wrapper (NCHW in / NCHW out); transposes only at the boundary."""
    x_nhwc = jnp.transpose(x_nchw, (0, 2, 3, 1))
    y_nhwc = dense_layer_forward_nhwc(x_nhwc, fp)
    return jnp.transpose(y_nhwc, (0, 3, 1, 2))


# --------------------------------------------------------------------------------------
# Parameters (PyTorch-equivalent init) + BN/bias folding
# --------------------------------------------------------------------------------------
def init_params(key, in_channels, growth_rate=32, expansion=4, eps=1e-5):
    C = expansion * growth_rate
    G = growth_rate
    k1, k2, k3 = jax.random.split(key, 3)

    def kaiming_uniform(k, shape, fan_in):
        # kaiming_uniform_(mode='fan_in', nonlinearity='relu'): bound = sqrt(6/fan_in)
        bound = float(np.sqrt(6.0 / fan_in))
        return jax.random.uniform(k, shape, jnp.float32, -bound, bound)

    def bn(n):
        return dict(gamma=jnp.ones((n,), jnp.float32),
                    beta=jnp.zeros((n,), jnp.float32),
                    mean=jnp.zeros((n,), jnp.float32),
                    var=jnp.ones((n,), jnp.float32))

    return dict(
        eps=eps,
        # conv_expand: torch (C, Cin, 1, 1) -> (Cin, C); fan_in = Cin
        w_exp=kaiming_uniform(k1, (in_channels, C), in_channels),
        b_exp=jnp.zeros((C,), jnp.float32),
        bn_exp=bn(C),
        # conv_dwise: torch (C, 1, 3, 3), groups=C -> (3, 3, C); fan_in = 9
        w_dw=kaiming_uniform(k2, (3, 3, C), 9),
        b_dw=jnp.zeros((C,), jnp.float32),
        bn_dw=bn(C),
        # conv_shrink: torch (G, C, 1, 1) -> (C, G); fan_in = C
        w_shr=kaiming_uniform(k3, (C, G), C),
        b_shr=jnp.zeros((G,), jnp.float32),
        bn_shr=bn(G),
    )


def fold_params(p):
    """Fold conv bias + inference-mode BatchNorm into the conv weights, pack operands."""
    eps = p["eps"]

    def fold(w, b, bn, out_axis):
        s = bn["gamma"] / jnp.sqrt(bn["var"] + eps)
        t = bn["beta"] - bn["mean"] * s
        shape = [1] * w.ndim
        shape[out_axis] = -1
        return w * s.reshape(shape), b * s + t

    w_exp, b_exp = fold(p["w_exp"], p["b_exp"], p["bn_exp"], out_axis=1)
    w_dw, b_dw = fold(p["w_dw"], p["b_dw"], p["bn_dw"], out_axis=2)
    w_shr, b_shr = fold(p["w_shr"], p["b_shr"], p["bn_shr"], out_axis=1)
    C = w_exp.shape[1]
    G = w_shr.shape[1]
    cvec = jnp.concatenate([w_dw.reshape(9, C), b_exp[None, :], b_dw[None, :]], axis=0)
    return dict(
        w_exp=w_exp.astype(jnp.float32),                 # (Cin, C)
        cvec=cvec.astype(jnp.float32),                   # (11, C)
        w_shr=w_shr.astype(jnp.bfloat16),                # (C, G) bf16 MXU operand
        b_shr=b_shr.reshape(1, G).astype(jnp.float32),   # (1, G)
    )


# --------------------------------------------------------------------------------------
# Plain-JAX reference (same folded math, no Pallas) for verification
# --------------------------------------------------------------------------------------
def _new_features_ref_nhwc(x, fp):
    H, W = x.shape[1], x.shape[2]
    C = fp["cvec"].shape[1]
    w_dw = fp["cvec"][:9].reshape(3, 3, C)
    b_exp, b_dw = fp["cvec"][9], fp["cvec"][10]

    t = jnp.clip(jnp.einsum("nhwc,cd->nhwd", x, fp["w_exp"]) + b_exp, 0.0, 6.0)
    tp = jnp.pad(t, ((0, 0), (1, 1), (1, 1), (0, 0)))
    acc = jnp.zeros_like(t)
    for dy in range(3):
        for dx in range(3):
            acc = acc + tp[:, dy:dy + H, dx:dx + W, :] * w_dw[dy, dx]
    acc = jnp.clip(acc + b_dw, 0.0, 6.0)
    # Mirror the kernel's bf16 MXU operands (f32 accumulation).
    o = jnp.einsum("nhwc,cg->nhwg", acc.astype(jnp.bfloat16), fp["w_shr"],
                   preferred_element_type=jnp.float32)
    o = jnp.clip(o + fp["b_shr"][0], 0.0, 6.0)
    return o.astype(x.dtype)


def _dense_layer_ref(x_nchw, fp):
    x_nhwc = jnp.transpose(x_nchw, (0, 2, 3, 1))
    y = jnp.concatenate([x_nhwc, _new_features_ref_nhwc(x_nhwc, fp)], axis=-1)
    return jnp.transpose(y, (0, 3, 1, 2))


# --------------------------------------------------------------------------------------
if __name__ == "__main__":
    key = jax.random.PRNGKey(0)
    kx, kp = jax.random.split(key)

    N, Cin, H, W = 2, 4, 16, 16
    growth_rate, expansion = 32, 4

    x = jax.random.normal(kx, (N, Cin, H, W), jnp.float32)   # PyTorch NCHW input
    params = fold_params(init_params(kp, Cin, growth_rate, expansion))

    out = jax.block_until_ready(dense_layer_forward(x, params))
    assert out.shape == (N, Cin + growth_rate, H, W), out.shape

    ref = jax.block_until_ready(_dense_layer_ref(x, params))
    # Tolerance accounts for the bf16 operands of the shrink matmul.
    np.testing.assert_allclose(np.asarray(out), np.asarray(ref), rtol=1e-2, atol=1e-2)

    print("KERNEL_OK")
</pallas_src>

<mosaic_0001>
module attributes {stable_mosaic.version = 11 : i64} {
  func.func @_dense_layer_kernel(%arg0: i32, %arg1: memref<1x16x16x4xf32, #tpu.memory_space<vmem>>, %arg2: memref<4x128xf32, #tpu.memory_space<vmem>>, %arg3: memref<11x128xf32, #tpu.memory_space<vmem>>, %arg4: memref<256x4xf32, #tpu.memory_space<vmem>>, %arg5: memref<128x32xbf16, #tpu.memory_space<vmem>>, %arg6: memref<1x32xf32, #tpu.memory_space<vmem>>, %arg7: memref<1x16x16x32xf32, #tpu.memory_space<vmem>>, %arg8: memref<288x128xf32, #tpu.memory_space<vmem>>) attributes {dimension_semantics = [#tpu.dimension_semantics<parallel>], iteration_bounds = array<i64: 2>, scalar_prefetch = 0 : i64, scratch_operands = 1 : i64, tpu.core_type = #tpu.core_type<tc>, window_params = [{transform_indices = @transform_0, window_bounds = array<i64: 1, 16, 16, 4>}, {pipeline_mode = #tpu.pipeline_mode<synchronous>, transform_indices = @transform_1, window_bounds = array<i64: 4, 128>}, {pipeline_mode = #tpu.pipeline_mode<synchronous>, transform_indices = @transform_2, window_bounds = array<i64: 11, 128>}, {pipeline_mode = #tpu.pipeline_mode<synchronous>, transform_indices = @transform_3, window_bounds = array<i64: 256, 4>}, {pipeline_mode = #tpu.pipeline_mode<synchronous>, transform_indices = @transform_4, window_bounds = array<i64: 128, 32>}, {pipeline_mode = #tpu.pipeline_mode<synchronous>, transform_indices = @transform_5, window_bounds = array<i64: 1, 32>}, {transform_indices = @transform_6, window_bounds = array<i64: 1, 16, 16, 32>}]} {
    %c0 = arith.constant 0 : index
    %c0_0 = arith.constant 0 : index
    %0 = vector.load %arg3[%c0, %c0_0] : memref<11x128xf32, #tpu.memory_space<vmem>>, vector<11x128xf32>
    %c0_1 = arith.constant 0 : index
    %c0_2 = arith.constant 0 : index
    %1 = vector.load %arg4[%c0_1, %c0_2] : memref<256x4xf32, #tpu.memory_space<vmem>>, vector<256x4xf32>
    %2 = vector.extract_strided_slice %1 {offsets = [0, 0], sizes = [256, 1], strides = [1, 1]} : vector<256x4xf32> to vector<256x1xf32>
    %3 = vector.extract_strided_slice %1 {offsets = [0, 1], sizes = [256, 1], strides = [1, 1]} : vector<256x4xf32> to vector<256x1xf32>
    %4 = vector.extract_strided_slice %1 {offsets = [0, 2], sizes = [256, 1], strides = [1, 1]} : vector<256x4xf32> to vector<256x1xf32>
    %5 = vector.extract_strided_slice %1 {offsets = [0, 3], sizes = [256, 1], strides = [1, 1]} : vector<256x4xf32> to vector<256x1xf32>
    %c0_3 = arith.constant 0 : index
    %c0_4 = arith.constant 0 : index
    %c0_5 = arith.constant 0 : index
    %c0_6 = arith.constant 0 : index
    %6 = vector.load %arg1[%c0_3, %c0_4, %c0_5, %c0_6] : memref<1x16x16x4xf32, #tpu.memory_space<vmem>>, vector<1x16x16x4xf32>
    %7 = vector.shape_cast %6 : vector<1x16x16x4xf32> to vector<256x4xf32>
    %c0_7 = arith.constant 0 : index
    %c0_8 = arith.constant 0 : index
    %8 = vector.load %arg2[%c0_7, %c0_8] : memref<4x128xf32, #tpu.memory_space<vmem>>, vector<4x128xf32>
    %cst = arith.constant dense<0.000000e+00> : vector<256x128xf32>
    %9 = tpu.matmul %7, %8, %cst {dimension_numbers = #tpu.dot_dimension_numbers<[1], [0], [0], [1], [0, 0, 1, 1], [], []>} : vector<256x4xf32>, vector<4x128xf32>, vector<256x128xf32> -> vector<256x128xf32>
    %10 = vector.extract_strided_slice %0 {offsets = [9, 0], sizes = [1, 128], strides = [1, 1]} : vector<11x128xf32> to vector<1x128xf32>
    %11 = vector.broadcast %10 : vector<1x128xf32> to vector<256x128xf32>
    %12 = arith.addf %9, %11 : vector<256x128xf32>
    %cst_9 = arith.constant 0.000000e+00 : f32
    %cst_10 = arith.constant 6.000000e+00 : f32
    %13 = vector.broadcast %cst_9 : f32 to vector<256x128xf32>
    %14 = arith.maximumf %13, %12 : vector<256x128xf32>
    %15 = vector.broadcast %cst_10 : f32 to vector<256x128xf32>
    %16 = arith.minimumf %15, %14 : vector<256x128xf32>
    %cst_11 = arith.constant 0.000000e+00 : f32
    %17 = vector.broadcast %cst_11 : f32 to vector<16x128xf32>
    %c0_12 = arith.constant 0 : index
    %c0_13 = arith.constant 0 : index
    %18 = vector.load %arg8[%c0_12, %c0_13] : memref<288x128xf32, #tpu.memory_space<vmem>>, vector<16x128xf32>
    tpu.vector_store %arg8[%c0_12, %c0_13], %17 {strides = array<i32>} : memref<288x128xf32, #tpu.memory_space<vmem>>, vector<16x128xf32>,
    %c272 = arith.constant 272 : index
    %c0_14 = arith.constant 0 : index
    %19 = vector.load %arg8[%c272, %c0_14] : memref<288x128xf32, #tpu.memory_space<vmem>>, vector<16x128xf32>
    tpu.vector_store %arg8[%c272, %c0_14], %17 {strides = array<i32>} : memref<288x128xf32, #tpu.memory_space<vmem>>, vector<16x128xf32>,
    %c16 = arith.constant 16 : index
    %c0_15 = arith.constant 0 : index
    %20 = vector.load %arg8[%c16, %c0_15] : memref<288x128xf32, #tpu.memory_space<vmem>>, vector<256x128xf32>
    tpu.vector_store %arg8[%c16, %c0_15], %16 {strides = array<i32>} : memref<288x128xf32, #tpu.memory_space<vmem>>, vector<256x128xf32>,
    %c15 = arith.constant 15 : index
    %c0_16 = arith.constant 0 : index
    %21 = vector.load %arg8[%c15, %c0_16] : memref<288x128xf32, #tpu.memory_space<vmem>>, vector<256x128xf32>
    %22 = vector.broadcast %2 : vector<256x1xf32> to vector<256x128xf32>
    %23 = arith.mulf %21, %22 : vector<256x128xf32>
    %c17 = arith.constant 17 : index
    %c0_17 = arith.constant 0 : index
    %24 = vector.load %arg8[%c17, %c0_17] : memref<288x128xf32, #tpu.memory_space<vmem>>, vector<256x128xf32>
    %25 = vector.broadcast %3 : vector<256x1xf32> to vector<256x128xf32>
    %26 = arith.mulf %24, %25 : vector<256x128xf32>
    %27 = vector.extract_strided_slice %0 {offsets = [0, 0], sizes = [1, 128], strides = [1, 1]} : vector<11x128xf32> to vector<1x128xf32>
    %28 = vector.broadcast %27 : vector<1x128xf32> to vector<256x128xf32>
    %29 = arith.mulf %23, %28 : vector<256x128xf32>
    %30 = vector.extract_strided_slice %0 {offsets = [1, 0], sizes = [1, 128], strides = [1, 1]} : vector<11x128xf32> to vector<1x128xf32>
    %31 = vector.broadcast %30 : vector<1x128xf32> to vector<256x128xf32>
    %32 = arith.mulf %16, %31 : vector<256x128xf32>
    %33 = arith.addf %29, %32 : vector<256x128xf32>
    %34 = vector.extract_strided_slice %0 {offsets = [2, 0], sizes = [1, 128], strides = [1, 1]} : vector<11x128xf32> to vector<1x128xf32>
    %35 = vector.broadcast %34 : vector<1x128xf32> to vector<256x128xf32>
    %36 = arith.mulf %26, %35 : vector<256x128xf32>
    %37 = arith.addf %33, %36 : vector<256x128xf32>
    %38 = vector.extract_strided_slice %0 {offsets = [3, 0], sizes = [1, 128], strides = [1, 1]} : vector<11x128xf32> to vector<1x128xf32>
    %39 = vector.broadcast %38 : vector<1x128xf32> to vector<256x128xf32>
    %40 = arith.mulf %23, %39 : vector<256x128xf32>
    %41 = vector.extract_strided_slice %0 {offsets = [4, 0], sizes = [1, 128], strides = [1, 1]} : vector<11x128xf32> to vector<1x128xf32>
    %42 = vector.broadcast %41 : vector<1x128xf32> to vector<256x128xf32>
    %43 = arith.mulf %16, %42 : vector<256x128xf32>
    %44 = arith.addf %40, %43 : vector<256x128xf32>
    %45 = vector.extract_strided_slice %0 {offsets = [5, 0], sizes = [1, 128], strides = [1, 1]} : vector<11x128xf32> to vector<1x128xf32>
    %46 = vector.broadcast %45 : vector<1x128xf32> to vector<256x128xf32>
    %47 = arith.mulf %26, %46 : vector<256x128xf32>
    %48 = arith.addf %44, %47 : vector<256x128xf32>
    %49 = vector.extract_strided_slice %0 {offsets = [6, 0], sizes = [1, 128], strides = [1, 1]} : vector<11x128xf32> to vector<1x128xf32>
    %50 = vector.broadcast %49 : vector<1x128xf32> to vector<256x128xf32>
    %51 = arith.mulf %23, %50 : vector<256x128xf32>
    %52 = vector.extract_strided_slice %0 {offsets = [7, 0], sizes = [1, 128], strides = [1, 1]} : vector<11x128xf32> to vector<1x128xf32>
    %53 = vector.broadcast %52 : vector<1x128xf32> to vector<256x128xf32>
    %54 = arith.mulf %16, %53 : vector<256x128xf32>
    %55 = arith.addf %51, %54 : vector<256x128xf32>
    %56 = vector.extract_strided_slice %0 {offsets = [8, 0], sizes = [1, 128], strides = [1, 1]} : vector<11x128xf32> to vector<1x128xf32>
    %57 = vector.broadcast %56 : vector<1x128xf32> to vector<256x128xf32>
    %58 = arith.mulf %26, %57 : vector<256x128xf32>
    %59 = arith.addf %55, %58 : vector<256x128xf32>
    %c16_18 = arith.constant 16 : index
    %c0_19 = arith.constant 0 : index
    %60 = vector.load %arg8[%c16_18, %c0_19] : memref<288x128xf32, #tpu.memory_space<vmem>>, vector<256x128xf32>
    tpu.vector_store %arg8[%c16_18, %c0_19], %37 {strides = array<i32>} : memref<288x128xf32, #tpu.memory_space<vmem>>, vector<256x128xf32>,
    %c0_20 = arith.constant 0 : index
    %c0_21 = arith.constant 0 : index
    %61 = vector.load %arg8[%c0_20, %c0_21] : memref<288x128xf32, #tpu.memory_space<vmem>>, vector<256x128xf32>
    %62 = vector.broadcast %4 : vector<256x1xf32> to vector<256x128xf32>
    %63 = arith.mulf %62, %61 : vector<256x128xf32>
    %64 = arith.addf %48, %63 : vector<256x128xf32>
    %c16_22 = arith.constant 16 : index
    %c0_23 = arith.constant 0 : index
    %65 = vector.load %arg8[%c16_22, %c0_23] : memref<288x128xf32, #tpu.memory_space<vmem>>, vector<256x128xf32>
    tpu.vector_store %arg8[%c16_22, %c0_23], %59 {strides = array<i32>} : memref<288x128xf32, #tpu.memory_space<vmem>>, vector<256x128xf32>,
    %c32 = arith.constant 32 : index
    %c0_24 = arith.constant 0 : index
    %66 = vector.load %arg8[%c32, %c0_24] : memref<288x128xf32, #tpu.memory_space<vmem>>, vector<256x128xf32>
    %67 = vector.broadcast %5 : vector<256x1xf32> to vector<256x128xf32>
    %68 = arith.mulf %67, %66 : vector<256x128xf32>
    %69 = arith.addf %64, %68 : vector<256x128xf32>
    %70 = vector.extract_strided_slice %0 {offsets = [10, 0], sizes = [1, 128], strides = [1, 1]} : vector<11x128xf32> to vector<1x128xf32>
    %71 = vector.broadcast %70 : vector<1x128xf32> to vector<256x128xf32>
    %72 = arith.addf %69, %71 : vector<256x128xf32>
    %cst_25 = arith.constant 0.000000e+00 : f32
    %cst_26 = arith.constant 6.000000e+00 : f32
    %73 = vector.broadcast %cst_25 : f32 to vector<256x128xf32>
    %74 = arith.maximumf %73, %72 : vector<256x128xf32>
    %75 = vector.broadcast %cst_26 : f32 to vector<256x128xf32>
    %76 = arith.minimumf %75, %74 : vector<256x128xf32>
    %77 = arith.truncf %76 : vector<256x128xf32> to vector<256x128xbf16>
    %c0_27 = arith.constant 0 : index
    %c0_28 = arith.constant 0 : index
    %78 = vector.load %arg5[%c0_27, %c0_28] : memref<128x32xbf16, #tpu.memory_space<vmem>>, vector<128x32xbf16>
    %cst_29 = arith.constant dense<0.000000e+00> : vector<256x32xf32>
    %79 = tpu.matmul %77, %78, %cst_29 {dimension_numbers = #tpu.dot_dimension_numbers<[1], [0], [0], [1], [0, 0, 1, 1], [], []>} : vector<256x128xbf16>, vector<128x32xbf16>, vector<256x32xf32> -> vector<256x32xf32>
    %c0_30 = arith.constant 0 : index
    %c0_31 = arith.constant 0 : index
    %80 = vector.load %arg6[%c0_30, %c0_31] : memref<1x32xf32, #tpu.memory_space<vmem>>, vector<1x32xf32>
    %81 = vector.broadcast %80 : vector<1x32xf32> to vector<256x32xf32>
    %82 = arith.addf %79, %81 : vector<256x32xf32>
    %cst_32 = arith.constant 0.000000e+00 : f32
    %cst_33 = arith.constant 6.000000e+00 : f32
    %83 = vector.broadcast %cst_32 : f32 to vector<256x32xf32>
    %84 = arith.maximumf %83, %82 : vector<256x32xf32>
    %85 = vector.broadcast %cst_33 : f32 to vector<256x32xf32>
    %86 = arith.minimumf %85, %84 : vector<256x32xf32>
    %87 = vector.shape_cast %86 : vector<256x32xf32> to vector<1x16x16x32xf32>
    %c0_34 = arith.constant 0 : index
    %c0_35 = arith.constant 0 : index
    %c0_36 = arith.constant 0 : index
    %c0_37 = arith.constant 0 : index
    %88 = vector.load %arg7[%c0_34, %c0_35, %c0_36, %c0_37] : memref<1x16x16x32xf32, #tpu.memory_space<vmem>>, vector<1x16x16x32xf32>
    tpu.vector_store %arg7[%c0_34, %c0_35, %c0_36, %c0_37], %87 {strides = array<i32>} : memref<1x16x16x32xf32, #tpu.memory_space<vmem>>, vector<1x16x16x32xf32>,
    return
  }
  func.func @transform_0(%arg0: i32) -> (i32, i32, i32, i32) {
    %c0_i32 = arith.constant 0 : i32
    %c0_i32_0 = arith.constant 0 : i32
    %c0_i32_1 = arith.constant 0 : i32
    %c0_i32_2 = arith.constant 0 : i32
    return %arg0, %c0_i32, %c0_i32_0, %c0_i32_1 : i32, i32, i32, i32
  }
  func.func @transform_1(%arg0: i32) -> (i32, i32) {
    %c0_i32 = arith.constant 0 : i32
    %c0_i32_0 = arith.constant 0 : i32
    %c0_i32_1 = arith.constant 0 : i32
    return %c0_i32, %c0_i32_0 : i32, i32
  }
  func.func @transform_2(%arg0: i32) -> (i32, i32) {
    %c0_i32 = arith.constant 0 : i32
    %c0_i32_0 = arith.constant 0 : i32
    %c0_i32_1 = arith.constant 0 : i32
    return %c0_i32, %c0_i32_0 : i32, i32
  }
  func.func @transform_3(%arg0: i32) -> (i32, i32) {
    %c0_i32 = arith.constant 0 : i32
    %c0_i32_0 = arith.constant 0 : i32
    %c0_i32_1 = arith.constant 0 : i32
    return %c0_i32, %c0_i32_0 : i32, i32
  }
  func.func @transform_4(%arg0: i32) -> (i32, i32) {
    %c0_i32 = arith.constant 0 : i32
    %c0_i32_0 = arith.constant 0 : i32
    %c0_i32_1 = arith.constant 0 : i32
    return %c0_i32, %c0_i32_0 : i32, i32
  }
  func.func @transform_5(%arg0: i32) -> (i32, i32) {
    %c0_i32 = arith.constant 0 : i32
    %c0_i32_0 = arith.constant 0 : i32
    %c0_i32_1 = arith.constant 0 : i32
    return %c0_i32, %c0_i32_0 : i32, i32
  }
  func.func @transform_6(%arg0: i32) -> (i32, i32, i32, i32) {
    %c0_i32 = arith.constant 0 : i32
    %c0_i32_0 = arith.constant 0 : i32
    %c0_i32_1 = arith.constant 0 : i32
    %c0_i32_2 = arith.constant 0 : i32
    return %arg0, %c0_i32, %c0_i32_0, %c0_i32_1 : i32, i32, i32, i32
  }
}

</mosaic_0001>

<llo_original>
// kernel: dense_layer_forward.1
$region0: #{dense_layer_forward.1}
  #allocation0 [shape = 'u32[]', space=smem, size = 0x4, offset = 0x4, fixed_abs, tag = 'smem constant byte address 0x4 - core index']
  #allocation1 [shape = 'u32[72,128]{1,0:T(1,128)}', space=vmem, size = 0x9000, scoped, tag = 'internal scratch']
  #allocation2 [shape = 'f32[288,128]{1,0:T(8,128)}', space=vmem, size = 0x24000, scoped, tag = 'scratch operand']
  %s0 = inlined_call_operand.vmem [shape: f32[2,16,16,4], index: 0, kind: input, shape index: {}]
  %s1 = inlined_call_operand.vmem [shape: f32[4,128], index: 1, kind: input, shape index: {}]
  %s2 = inlined_call_operand.vmem [shape: f32[11,128], index: 2, kind: input, shape index: {}]
  %s3 = inlined_call_operand.vmem [shape: f32[256,4], index: 3, kind: input, shape index: {}]
  %s4 = inlined_call_operand.vmem [shape: bf16[128,32], index: 4, kind: input, shape index: {}]
  %s5 = inlined_call_operand.vmem [shape: f32[1,32], index: 5, kind: input, shape index: {}]
  %s6 = inlined_call_operand.vmem [shape: f32[2,16,16,32], index: 6, kind: output, shape index: {}]
  %s7 = sld [smem:[#allocation0]]
  $region57: #{dense_layer_forward.1} parent=0
    _
  %s9 = ssub.s32 1, %s7
  %s10 = scalar_select 0, %s9, %s7
  loop: start=0, step=1, limit=4
  $region2: #{dense_layer_forward.1} parent=0 // loop_pre_header
    _
  $region3: #{dense_layer_forward.1} parent=0 // loop_header
    %s12 = sphi 0, %s16
    %p13 = scmp.ge.s32.totalorder %s12, 4
    %s22 = sphi 0, %s24
    %s25 = sphi 0, %s22
    %s26 = sphi 0, %s25
    %s42 = sphi 0, %s26
    %s46 = sphi 0, %s46
    %s48 = sphi 0, %s46
    %s49 = sphi 0, %s48
    %s63 = sphi 0, %s49
    %s67 = sphi 0, %s67
    %s69 = sphi 0, %s67
    %s70 = sphi 0, %s69
    %s84 = sphi 0, %s70
    %s88 = sphi 0, %s88
    %s90 = sphi 0, %s88
    %s91 = sphi 0, %s90
    %s105 = sphi 0, %s91
    %s109 = sphi 0, %s109
    %s111 = sphi 0, %s109
    %s112 = sphi 0, %s111
    %s126 = sphi 0, %s112
    %s130 = sphi 0, %s130
    %s132 = sphi 0, %s130
    %s133 = sphi 0, %s132
    %s147 = sphi 0, %s133
    %s153 = sphi 0, %s155
    %s156 = sphi 0, %s153
    %s157 = sphi 0, %s156
    %s173 = sphi 0, %s157
  $region4: #{dense_layer_forward.1} parent=0 // loop_header_branch
    %15 = sbr.rel (%p13) target = $region8
  $region5: #{dense_layer_forward.1} parent=0 // loop_body
    %s17 = ssub.s32 %s12, 1
    %s18 = ssub.s32 %s12, 2
    %s19 = sadd.s32 %s12, 1
    %s20 = ssub.s32 %s12, %s19
    %p21 = scmp.eq.s32.totalorder %s20, 0
    %s23 = sadd.s32 %s22, 1
    %s24 = scalar_select %p21, %s22, %s23
    %p27 = pneg %p21
    %p28 = scmp.eq.s32.totalorder %s12, 1
    %p29 = por %p27, %p28
    %p30 = scmp.ne.s32.totalorder %s22, %s25
    %p31 = scmp.eq.s32.totalorder %s12, 0
    %p32 = por %p30, %p31
    %p33 = scmp.ne.s32.totalorder %s22, %s25
    %p34 = scmp.eq.s32.totalorder %s17, 1
    %p35 = por %p33, %p34
    %p36 = scmp.ne.s32.totalorder %s25, %s26
    %p37 = scmp.eq.s32.totalorder %s17, 0
    %p38 = por %p36, %p37
    %p39 = scmp.ne.s32.totalorder %s25, %s26
    %p40 = scmp.eq.s32.totalorder %s18, 1
    %p41 = por %p39, %p40
    %p43 = scmp.ne.s32.totalorder %s26, %s42
    %p44 = scmp.eq.s32.totalorder %s18, 0
    %p45 = por %p43, %p44
    %s47 = sadd.s32 %s46, 1
    %p50 = scmp.eq.s32.totalorder %s12, 1
    %p51 = scmp.ne.s32.totalorder %s46, %s48
    %p52 = scmp.eq.s32.totalorder %s12, 0
    %p53 = por %p51, %p52
    %p54 = scmp.ne.s32.totalorder %s46, %s48
    %p55 = scmp.eq.s32.totalorder %s17, 1
    %p56 = por %p54, %p55
    %p57 = scmp.ne.s32.totalorder %s48, %s49
    %p58 = scmp.eq.s32.totalorder %s17, 0
    %p59 = por %p57, %p58
    %p60 = scmp.ne.s32.totalorder %s48, %s49
    %p61 = scmp.eq.s32.totalorder %s18, 1
    %p62 = por %p60, %p61
    %p64 = scmp.ne.s32.totalorder %s49, %s63
    %p65 = scmp.eq.s32.totalorder %s18, 0
    %p66 = por %p64, %p65
    %s68 = sadd.s32 %s67, 1
    %p71 = scmp.eq.s32.totalorder %s12, 1
    %p72 = scmp.ne.s32.totalorder %s67, %s69
    %p73 = scmp.eq.s32.totalorder %s12, 0
    %p74 = por %p72, %p73
    %p75 = scmp.ne.s32.totalorder %s67, %s69
    %p76 = scmp.eq.s32.totalorder %s17, 1
    %p77 = por %p75, %p76
    %p78 = scmp.ne.s32.totalorder %s69, %s70
    %p79 = scmp.eq.s32.totalorder %s17, 0
    %p80 = por %p78, %p79
    %p81 = scmp.ne.s32.totalorder %s69, %s70
    %p82 = scmp.eq.s32.totalorder %s18, 1
    %p83 = por %p81, %p82
    %p85 = scmp.ne.s32.totalorder %s70, %s84
    %p86 = scmp.eq.s32.totalorder %s18, 0
    %p87 = por %p85, %p86
    %s89 = sadd.s32 %s88, 1
    %p92 = scmp.eq.s32.totalorder %s12, 1
    %p93 = scmp.ne.s32.totalorder %s88, %s90
    %p94 = scmp.eq.s32.totalorder %s12, 0
    %p95 = por %p93, %p94
    %p96 = scmp.ne.s32.totalorder %s88, %s90
    %p97 = scmp.eq.s32.totalorder %s17, 1
    %p98 = por %p96, %p97
    %p99 = scmp.ne.s32.totalorder %s90, %s91
    %p100 = scmp.eq.s32.totalorder %s17, 0
    %p101 = por %p99, %p100
    %p102 = scmp.ne.s32.totalorder %s90, %s91
    %p103 = scmp.eq.s32.totalorder %s18, 1
    %p104 = por %p102, %p103
    %p106 = scmp.ne.s32.totalorder %s91, %s105
    %p107 = scmp.eq.s32.totalorder %s18, 0
    %p108 = por %p106, %p107
    %s110 = sadd.s32 %s109, 1
    %p113 = scmp.eq.s32.totalorder %s12, 1
    %p114 = scmp.ne.s32.totalorder %s109, %s111
    %p115 = scmp.eq.s32.totalorder %s12, 0
    %p116 = por %p114, %p115
    %p117 = scmp.ne.s32.totalorder %s109, %s111
    %p118 = scmp.eq.s32.totalorder %s17, 1
    %p119 = por %p117, %p118
    %p120 = scmp.ne.s32.totalorder %s111, %s112
    %p121 = scmp.eq.s32.totalorder %s17, 0
    %p122 = por %p120, %p121
    %p123 = scmp.ne.s32.totalorder %s111, %s112
    %p124 = scmp.eq.s32.totalorder %s18, 1
    %p125 = por %p123, %p124
    %p127 = scmp.ne.s32.totalorder %s112, %s126
    %p128 = scmp.eq.s32.totalorder %s18, 0
    %p129 = por %p127, %p128
    %s131 = sadd.s32 %s130, 1
    %p134 = scmp.eq.s32.totalorder %s12, 1
    %p135 = scmp.ne.s32.totalorder %s130, %s132
    %p136 = scmp.eq.s32.totalorder %s12, 0
    %p137 = por %p135, %p136
    %p138 = scmp.ne.s32.totalorder %s130, %s132
    %p139 = scmp.eq.s32.totalorder %s17, 1
    %p140 = por %p138, %p139
    %p141 = scmp.ne.s32.totalorder %s132, %s133
    %p142 = scmp.eq.s32.totalorder %s17, 0
    %p143 = por %p141, %p142
    %p144 = scmp.ne.s32.totalorder %s132, %s133
    %p145 = scmp.eq.s32.totalorder %s18, 1
    %p146 = por %p144, %p145
    %p148 = scmp.ne.s32.totalorder %s133, %s147
    %p149 = scmp.eq.s32.totalorder %s18, 0
    %p150 = por %p148, %p149
    %s151 = ssub.s32 %s12, %s19
    %p152 = scmp.eq.s32.totalorder %s151, 0
    %s154 = sadd.s32 %s153, 1
    %s155 = scalar_select %p152, %s153, %s154
    %p158 = pneg %p152
    %p159 = scmp.eq.s32.totalorder %s12, 1
    %p160 = por %p158, %p159
    %p161 = scmp.ne.s32.totalorder %s153, %s156
    %p162 = scmp.eq.s32.totalorder %s12, 0
    %p163 = por %p161, %p162
    %p164 = scmp.ne.s32.totalorder %s153, %s156
    %p165 = scmp.eq.s32.totalorder %s17, 1
    %p166 = por %p164, %p165
    %p167 = scmp.ne.s32.totalorder %s156, %s157
    %p168 = scmp.eq.s32.totalorder %s17, 0
    %p169 = por %p167, %p168
    %p170 = scmp.ne.s32.totalorder %s156, %s157
    %p171 = scmp.eq.s32.totalorder %s18, 1
    %p172 = por %p170, %p171
    %p174 = scmp.ne.s32.totalorder %s157, %s173
    %p175 = scmp.eq.s32.totalorder %s18, 0
    %p176 = por %p174, %p175
    %p177 = scmp.le.s32.totalorder 1, %s12
    %p178 = scmp.lt.s32.totalorder %s12, 3
    %p179 = pnand %p177, %p178
    %p180 = pneg %p179
    // Predicated region
    $region9: #{dense_layer_forward.1} parent=5 // pred_check
      _
    $region10: #{dense_layer_forward.1} parent=5 // pred_check_branch
      %182 = sbr.rel (%p179) target = $region12
    $region11: #{dense_layer_forward.1} parent=5 // pred_region
      %s183 = ssub.s32 %s12, 1
      // Predicated region
      $region13: #{dense_layer_forward.1} parent=11 // pred_check
        %p184 = pneg %p59
      $region14: #{dense_layer_forward.1} parent=11 // pred_check_branch
        %186 = sbr.rel (%p184) target = $region16
      $region15: #{dense_layer_forward.1} parent=11 // pred_region
        _
      $region16: #{dense_layer_forward.1} parent=11 // pred_fallthru
        _
      // Predicated region
      $region17: #{dense_layer_forward.1} parent=11 // pred_check
        %p187 = pneg %p80
      $region18: #{dense_layer_forward.1} parent=11 // pred_check_branch
        %189 = sbr.rel (%p187) target = $region20
      $region19: #{dense_layer_forward.1} parent=11 // pred_region
        _
      $region20: #{dense_layer_forward.1} parent=11 // pred_fallthru
        _
      // Predicated region
      $region21: #{dense_layer_forward.1} parent=11 // pred_check
        %p190 = pneg %p101
      $region22: #{dense_layer_forward.1} parent=11 // pred_check_branch
        %192 = sbr.rel (%p190) target = $region24
      $region23: #{dense_layer_forward.1} parent=11 // pred_region
        _
      $region24: #{dense_layer_forward.1} parent=11 // pred_fallthru
        _
      // Predicated region
      $region25: #{dense_layer_forward.1} parent=11 // pred_check
        %p193 = pneg %p122
      $region26: #{dense_layer_forward.1} parent=11 // pred_check_branch
        %195 = sbr.rel (%p193) target = $region28
      $region27: #{dense_layer_forward.1} parent=11 // pred_region
        _
      $region28: #{dense_layer_forward.1} parent=11 // pred_fallthru
        _
      // Predicated region
      $region29: #{dense_layer_forward.1} parent=11 // pred_check
        %p196 = pneg %p143
      $region30: #{dense_layer_forward.1} parent=11 // pred_check_branch
        %198 = sbr.rel (%p196) target = $region32
      $region31: #{dense_layer_forward.1} parent=11 // pred_region
        _
      $region32: #{dense_layer_forward.1} parent=11 // pred_fallthru
        _
    $region12: #{dense_layer_forward.1} parent=5 // pred_fallthru
      _
    %p199 = scmp.lt.s32.totalorder %s12, 2
    // Predicated region
    $region33: #{dense_layer_forward.1} parent=5 // pred_check
      %p200 = pneg %p199
    $region34: #{dense_layer_forward.1} parent=5 // pred_check_branch
      %202 = sbr.rel (%p200) target = $region36
    $region35: #{dense_layer_forward.1} parent=5 // pred_region
      // Predicated region
      $region37: #{dense_layer_forward.1} parent=35 // pred_check
        %p203 = pneg %p32
      $region38: #{dense_layer_forward.1} parent=35 // pred_check_branch
        %205 = sbr.rel (%p203) target = $region40
      $region39: #{dense_layer_forward.1} parent=35 // pred_region
        %p206 = scmp.lt.s32.totalorder %s12, 1
        %s207 = scalar_select %p206, %s12, 1
        %s208 = smul.addr %s207, 32
        %s209 = smul.addr %s208, 8
        %s210 = scalar_lea.vmem %s0, %s209
      $region40: #{dense_layer_forward.1} parent=35 // pred_fallthru
        _
    $region36: #{dense_layer_forward.1} parent=5 // pred_fallthru
      _
    %p211 = scmp.le.s32.totalorder 1, %s12
    %p212 = scmp.lt.s32.totalorder %s12, 3
    %p213 = pnand %p211, %p212
    %p214 = pneg %p213
    // Predicated region
    $region41: #{dense_layer_forward.1} parent=5 // pred_check
      _
    $region42: #{dense_layer_forward.1} parent=5 // pred_check_branch
      %216 = sbr.rel (%p213) target = $region44
    $region43: #{dense_layer_forward.1} parent=5 // pred_region
      %s217 = ssub.s32 %s12, 1
      %p218 = scmp.lt.s32.totalorder %s17, 1
      %s219 = scalar_select %p218, %s17, 1
      %s220 = smul.addr %s219, 32
      %s221 = smul.addr %s220, 8
      %s222 = scalar_lea.vmem %s0, %s221
      %p223 = pneg %p38
      %p224 = pneg %p35
      %p225 = pneg %p59
      %p226 = pneg %p56
      %p227 = pneg %p80
      %p228 = pneg %p77
      %p229 = pneg %p101
      %p230 = pneg %p98
      %p231 = pneg %p122
      %p232 = pneg %p119
      %p233 = pneg %p143
      %p234 = pneg %p140
      %p235 = pneg %p169
      %p236 = pneg %p166
      %p237 = scmp.lt.s32.totalorder %s17, 1
      %s238 = scalar_select %p237, %s17, 1
      %s239 = smul.addr %s238, 32
      %s240 = smul.addr %s239, 8
      %s241 = scalar_lea.vmem %s6, %s240
      %p242 = scmp.lt.s32.totalorder %s17, 1
      %s243 = scalar_select %p242, %s17, 1
      %s244 = smul.addr %s243, 32
      %s245 = smul.addr %s244, 8
      %s246 = scalar_lea.vmem %s0, %s245
      %p247 = scmp.lt.s32.totalorder %s17, 1
      %s248 = scalar_select %p247, %s17, 1
      %s249 = smul.addr %s248, 32
      %s250 = smul.addr %s249, 8
      %s251 = scalar_lea.vmem %s6, %s250
      %v252 = vld [vmem:[%s2] sm:$0xff]
      %v253 = vld [vmem:[%s2 + $0x8] sm:$0x7]
      %v254 = vld [vmem:[%s3] sm:$0xff]
      %v255 = vld [vmem:[%s3 + $0x8] sm:$0xff]
      %v256 = vld [vmem:[%s3 + $0x10] sm:$0xff]
      %v257 = vld [vmem:[%s3 + $0x18] sm:$0xff]
      %v258 = vld [vmem:[%s3 + $0x20] sm:$0xff]
      %v259 = vld [vmem:[%s3 + $0x28] sm:$0xff]
      %v260 = vld [vmem:[%s3 + $0x30] sm:$0xff]
      %v261 = vld [vmem:[%s3 + $0x38] sm:$0xff]
      %v262 = vld [vmem:[%s3 + $0x40] sm:$0xff]
      %v263 = vld [vmem:[%s3 + $0x48] sm:$0xff]
      %v264 = vld [vmem:[%s3 + $0x50] sm:$0xff]
      %v265 = vld [vmem:[%s3 + $0x58] sm:$0xff]
      %v266 = vld [vmem:[%s3 + $0x60] sm:$0xff]
      %v267 = vld [vmem:[%s3 + $0x68] sm:$0xff]
      %v268 = vld [vmem:[%s3 + $0x70] sm:$0xff]
      %v269 = vld [vmem:[%s3 + $0x78] sm:$0xff]
      %v270 = vld [vmem:[%s3 + $0x80] sm:$0xff]
      %v271 = vld [vmem:[%s3 + $0x88] sm:$0xff]
      %v272 = vld [vmem:[%s3 + $0x90] sm:$0xff]
      %v273 = vld [vmem:[%s3 + $0x98] sm:$0xff]
      %v274 = vld [vmem:[%s3 + $0xa0] sm:$0xff]
      %v275 = vld [vmem:[%s3 + $0xa8] sm:$0xff]
      %v276 = vld [vmem:[%s3 + $0xb0] sm:$0xff]
      %v277 = vld [vmem:[%s3 + $0xb8] sm:$0xff]
      %v278 = vld [vmem:[%s3 + $0xc0] sm:$0xff]
      %v279 = vld [vmem:[%s3 + $0xc8] sm:$0xff]
      %v280 = vld [vmem:[%s3 + $0xd0] sm:$0xff]
      %v281 = vld [vmem:[%s3 + $0xd8] sm:$0xff]
      %v282 = vld [vmem:[%s3 + $0xe0] sm:$0xff]
      %v283 = vld [vmem:[%s3 + $0xe8] sm:$0xff]
      %v284 = vld [vmem:[%s3 + $0xf0] sm:$0xff]
      %v285 = vld [vmem:[%s3 + $0xf8] sm:$0xff]
      %v286 = vld [vmem:[%s246] sm:$0xff]
      %v287 = vld [vmem:[%s246 + $0x8] sm:$0xff]
      %v288 = vld [vmem:[%s246 + $0x10] sm:$0xff]
      %v289 = vld [vmem:[%s246 + $0x18] sm:$0xff]
      %v290 = vld [vmem:[%s246 + $0x20] sm:$0xff]
      %v291 = vld [vmem:[%s246 + $0x28] sm:$0xff]
      %v292 = vld [vmem:[%s246 + $0x30] sm:$0xff]
      %v293 = vld [vmem:[%s246 + $0x38] sm:$0xff]
      %v294 = vld [vmem:[%s246 + $0x40] sm:$0xff]
      %v295 = vld [vmem:[%s246 + $0x48] sm:$0xff]
      %v296 = vld [vmem:[%s246 + $0x50] sm:$0xff]
      %v297 = vld [vmem:[%s246 + $0x58] sm:$0xff]
      %v298 = vld [vmem:[%s246 + $0x60] sm:$0xff]
      %v299 = vld [vmem:[%s246 + $0x68] sm:$0xff]
      %v300 = vld [vmem:[%s246 + $0x70] sm:$0xff]
      %v301 = vld [vmem:[%s246 + $0x78] sm:$0xff]
      %v302 = vld [vmem:[%s246 + $0x80] sm:$0xff]
      %v303 = vld [vmem:[%s246 + $0x88] sm:$0xff]
      %v304 = vld [vmem:[%s246 + $0x90] sm:$0xff]
      %v305 = vld [vmem:[%s246 + $0x98] sm:$0xff]
      %v306 = vld [vmem:[%s246 + $0xa0] sm:$0xff]
      %v307 = vld [vmem:[%s246 + $0xa8] sm:$0xff]
      %v308 = vld [vmem:[%s246 + $0xb0] sm:$0xff]
      %v309 = vld [vmem:[%s246 + $0xb8] sm:$0xff]
      %v310 = vld [vmem:[%s246 + $0xc0] sm:$0xff]
      %v311 = vld [vmem:[%s246 + $0xc8] sm:$0xff]
      %v312 = vld [vmem:[%s246 + $0xd0] sm:$0xff]
      %v313 = vld [vmem:[%s246 + $0xd8] sm:$0xff]
      %v314 = vld [vmem:[%s246 + $0xe0] sm:$0xff]
      %v315 = vld [vmem:[%s246 + $0xe8] sm:$0xff]
      %v316 = vld [vmem:[%s246 + $0xf0] sm:$0xff]
      %v317 = vld [vmem:[%s246 + $0xf8] sm:$0xff]
      %v318 = vld [vmem:[%s1] sm:$0xf]
      %v319 = vperm.slane %v253, 1
      %vm320 = vcmask 31744
      %v322 = vsel %vm320, %v286, 0
      %v325 = vsel %vm320, %v287, 0
      %v328 = vsel %vm320, %v288, 0
      %v331 = vsel %vm320, %v289, 0
      %v334 = vsel %vm320, %v290, 0
      %v337 = vsel %vm320, %v291, 0
      %v340 = vsel %vm320, %v292, 0
      %v343 = vsel %vm320, %v293, 0
      %v346 = vsel %vm320, %v294, 0
      %v349 = vsel %vm320, %v295, 0
      %v352 = vsel %vm320, %v296, 0
      %v355 = vsel %vm320, %v297, 0
      %v358 = vsel %vm320, %v298, 0
      %v361 = vsel %vm320, %v299, 0
      %v364 = vsel %vm320, %v300, 0
      %v367 = vsel %vm320, %v301, 0
      %v370 = vsel %vm320, %v302, 0
      %v373 = vsel %vm320, %v303, 0
      %v376 = vsel %vm320, %v304, 0
      %v379 = vsel %vm320, %v305, 0
      %v382 = vsel %vm320, %v306, 0
      %v385 = vsel %vm320, %v307, 0
      %v388 = vsel %vm320, %v308, 0
      %v391 = vsel %vm320, %v309, 0
      %v394 = vsel %vm320, %v310, 0
      %v397 = vsel %vm320, %v311, 0
      %v400 = vsel %vm320, %v312, 0
      %v403 = vsel %vm320, %v313, 0
      %v406 = vsel %vm320, %v314, 0
      %v409 = vsel %vm320, %v315, 0
      %v412 = vsel %vm320, %v316, 0
      %v415 = vsel %vm320, %v317, 0
      %vm417 = vcmask 1043456
      %v419 = vsel %vm417, %v318, 0
      %421 = vmatpush.msra.mxu0 0.0
      %422 = vmatpush.msra.mxu0 0.0
      %423 = vmatpush.msra.mxu0 0.0
      %424 = vmatpush.msra.mxu0 0.0
      %425 = vmatpush.msra.mxu0 0.0
      %426 = vmatpush.msra.mxu0 0.0
      %427 = vmatpush.msra.mxu0 0.0
      %428 = vmatpush.msra.mxu0 0.0
      %429 = vmatpush.msra.mxu0 0.0
      %430 = vmatpush.msra.mxu0 0.0
      %431 = vmatpush.msra.mxu0 0.0
      %432 = vmatpush.msra.mxu0 0.0
      %433 = vmatpush.msra.mxu0 0.0
      %434 = vmatpush.msra.mxu0 0.0
      %435 = vmatpush.msra.mxu0 0.0
      %436 = vmatpush.msra.mxu0 %v419
      %437 = vmatmul.f32.gmra.mxu0 %v322
      %v438 = vpop.f32.mrf.mxu0
      %v439 = vadd.f32 %v319, %v438
      %440 = vmatmul.f32.gmra.mxu0 %v325
      %v441 = vpop.f32.mrf.mxu0
      %v442 = vadd.f32 %v319, %v441
      %443 = vmatmul.f32.gmra.mxu0 %v328
      %v444 = vpop.f32.mrf.mxu0
      %v445 = vadd.f32 %v319, %v444
      %446 = vmatmul.f32.gmra.mxu0 %v331
      %v447 = vpop.f32.mrf.mxu0
      %v448 = vadd.f32 %v319, %v447
      %449 = vmatmul.f32.gmra.mxu0 %v334
      %v450 = vpop.f32.mrf.mxu0
      %v451 = vadd.f32 %v319, %v450
      %452 = vmatmul.f32.gmra.mxu0 %v337
      %v453 = vpop.f32.mrf.mxu0
      %v454 = vadd.f32 %v319, %v453
      %455 = vmatmul.f32.gmra.mxu0 %v340
      %v456 = vpop.f32.mrf.mxu0
      %v457 = vadd.f32 %v319, %v456
      %458 = vmatmul.f32.gmra.mxu0 %v343
      %v459 = vpop.f32.mrf.mxu0
      %v460 = vadd.f32 %v319, %v459
      %461 = vmatmul.f32.gmra.mxu0 %v346
      %v462 = vpop.f32.mrf.mxu0
      %v463 = vadd.f32 %v319, %v462
      %464 = vmatmul.f32.gmra.mxu0 %v349
      %v465 = vpop.f32.mrf.mxu0
      %v466 = vadd.f32 %v319, %v465
      %467 = vmatmul.f32.gmra.mxu0 %v352
      %v468 = vpop.f32.mrf.mxu0
      %v469 = vadd.f32 %v319, %v468
      %470 = vmatmul.f32.gmra.mxu0 %v355
      %v471 = vpop.f32.mrf.mxu0
      %v472 = vadd.f32 %v319, %v471
      %473 = vmatmul.f32.gmra.mxu0 %v358
      %v474 = vpop.f32.mrf.mxu0
      %v475 = vadd.f32 %v319, %v474
      %476 = vmatmul.f32.gmra.mxu0 %v361
      %v477 = vpop.f32.mrf.mxu0
      %v478 = vadd.f32 %v319, %v477
      %479 = vmatmul.f32.gmra.mxu0 %v364
      %v480 = vpop.f32.mrf.mxu0
      %v481 = vadd.f32 %v319, %v480
      %482 = vmatmul.f32.gmra.mxu0 %v367
      %v483 = vpop.f32.mrf.mxu0
      %v484 = vadd.f32 %v319, %v483
      %485 = vmatmul.f32.gmra.mxu0 %v370
      %v486 = vpop.f32.mrf.mxu0
      %v487 = vadd.f32 %v319, %v486
      %488 = vmatmul.f32.gmra.mxu0 %v373
      %v489 = vpop.f32.mrf.mxu0
      %v490 = vadd.f32 %v319, %v489
      %491 = vmatmul.f32.gmra.mxu0 %v376
      %v492 = vpop.f32.mrf.mxu0
      %v493 = vadd.f32 %v319, %v492
      %494 = vmatmul.f32.gmra.mxu0 %v379
      %v495 = vpop.f32.mrf.mxu0
      %v496 = vadd.f32 %v319, %v495
      %497 = vmatmul.f32.gmra.mxu0 %v382
      %v498 = vpop.f32.mrf.mxu0
      %v499 = vadd.f32 %v319, %v498
      %500 = vmatmul.f32.gmra.mxu0 %v385
      %v501 = vpop.f32.mrf.mxu0
      %v502 = vadd.f32 %v319, %v501
      %503 = vmatmul.f32.gmra.mxu0 %v388
      %v504 = vpop.f32.mrf.mxu0
      %v505 = vadd.f32 %v319, %v504
      %506 = vmatmul.f32.gmra.mxu0 %v391
      %v507 = vpop.f32.mrf.mxu0
      %v508 = vadd.f32 %v319, %v507
      %509 = vmatmul.f32.gmra.mxu0 %v394
      %v510 = vpop.f32.mrf.mxu0
      %v511 = vadd.f32 %v319, %v510
      %512 = vmatmul.f32.gmra.mxu0 %v397
      %v513 = vpop.f32.mrf.mxu0
      %v514 = vadd.f32 %v319, %v513
      %515 = vmatmul.f32.gmra.mxu0 %v400
      %v516 = vpop.f32.mrf.mxu0
      %v517 = vadd.f32 %v319, %v516
      %518 = vmatmul.f32.gmra.mxu0 %v403
      %v519 = vpop.f32.mrf.mxu0
      %v520 = vadd.f32 %v319, %v519
      %521 = vmatmul.f32.gmra.mxu0 %v406
      %v522 = vpop.f32.mrf.mxu0
      %v523 = vadd.f32 %v319, %v522
      %524 = vmatmul.f32.gmra.mxu0 %v409
      %v525 = vpop.f32.mrf.mxu0
      %v526 = vadd.f32 %v319, %v525
      %527 = vmatmul.f32.gmra.mxu0 %v412
      %v528 = vpop.f32.mrf.mxu0
      %v529 = vadd.f32 %v319, %v528
      %530 = vmatmul.f32.gmra.mxu0 %v415
      %v531 = vpop.f32.mrf.mxu0
      %v532 = vadd.f32 %v319, %v531
      %533 = vdwg.mxu0
      %v534 = vmax.f32 %v439, 0.0
      %v535 = vmax.f32 %v442, 0.0
      %v536 = vmax.f32 %v445, 0.0
      %v537 = vmax.f32 %v448, 0.0
      %v538 = vmax.f32 %v451, 0.0
      %v539 = vmax.f32 %v454, 0.0
      %v540 = vmax.f32 %v457, 0.0
      %v541 = vmax.f32 %v460, 0.0
      %v542 = vmax.f32 %v463, 0.0
      %v543 = vmax.f32 %v466, 0.0
      %v544 = vmax.f32 %v469, 0.0
      %v545 = vmax.f32 %v472, 0.0
      %v546 = vmax.f32 %v475, 0.0
      %v547 = vmax.f32 %v478, 0.0
      %v548 = vmax.f32 %v481, 0.0
      %v549 = vmax.f32 %v484, 0.0
      %v550 = vmax.f32 %v487, 0.0
      %v551 = vmax.f32 %v490, 0.0
      %v552 = vmax.f32 %v493, 0.0
      %v553 = vmax.f32 %v496, 0.0
      %v554 = vmax.f32 %v499, 0.0
      %v555 = vmax.f32 %v502, 0.0
      %v556 = vmax.f32 %v505, 0.0
      %v557 = vmax.f32 %v508, 0.0
      %v558 = vmax.f32 %v511, 0.0
      %v559 = vmax.f32 %v514, 0.0
      %v560 = vmax.f32 %v517, 0.0
      %v561 = vmax.f32 %v520, 0.0
      %v562 = vmax.f32 %v523, 0.0
      %v563 = vmax.f32 %v526, 0.0
      %v564 = vmax.f32 %v529, 0.0
      %v565 = vmax.f32 %v532, 0.0
      %v566 = vmin.f32 %v534, 6.0
      %v567 = vmin.f32 %v535, 6.0
      %v568 = vmin.f32 %v536, 6.0
      %v569 = vmin.f32 %v537, 6.0
      %v570 = vmin.f32 %v538, 6.0
      %v571 = vmin.f32 %v539, 6.0
      %v572 = vmin.f32 %v540, 6.0
      %v573 = vmin.f32 %v541, 6.0
      %v574 = vmin.f32 %v542, 6.0
      %v575 = vmin.f32 %v543, 6.0
      %v576 = vmin.f32 %v544, 6.0
      %v577 = vmin.f32 %v545, 6.0
      %v578 = vmin.f32 %v546, 6.0
      %v579 = vmin.f32 %v547, 6.0
      %v580 = vmin.f32 %v548, 6.0
      %v581 = vmin.f32 %v549, 6.0
      %v582 = vmin.f32 %v550, 6.0
      %v583 = vmin.f32 %v551, 6.0
      %v584 = vmin.f32 %v552, 6.0
      %v585 = vmin.f32 %v553, 6.0
      %v586 = vmin.f32 %v554, 6.0
      %v587 = vmin.f32 %v555, 6.0
      %v588 = vmin.f32 %v556, 6.0
      %v589 = vmin.f32 %v557, 6.0
      %v590 = vmin.f32 %v558, 6.0
      %v591 = vmin.f32 %v559, 6.0
      %v592 = vmin.f32 %v560, 6.0
      %v593 = vmin.f32 %v561, 6.0
      %v594 = vmin.f32 %v562, 6.0
      %v595 = vmin.f32 %v563, 6.0
      %v596 = vmin.f32 %v564, 6.0
      %v597 = vmin.f32 %v565, 6.0
      %598 = vst [vmem:[#allocation2] sm:$0xff] 0.0
      %599 = vst [vmem:[#allocation2 + $0x8] sm:$0xff] 0.0
      %600 = vst [vmem:[#allocation2 + $0x110] sm:$0xff] 0.0
      %601 = vst [vmem:[#allocation2 + $0x118] sm:$0xff] 0.0
      %602 = vst [vmem:[#allocation2 + $0x10] sm:$0xff] %v566
      %603 = vst [vmem:[#allocation2 + $0x18] sm:$0xff] %v567
      %604 = vst [vmem:[#allocation2 + $0x20] sm:$0xff] %v568
      %605 = vst [vmem:[#allocation2 + $0x28] sm:$0xff] %v569
      %606 = vst [vmem:[#allocation2 + $0x30] sm:$0xff] %v570
      %607 = vst [vmem:[#allocation2 + $0x38] sm:$0xff] %v571
      %608 = vst [vmem:[#allocation2 + $0x40] sm:$0xff] %v572
      %609 = vst [vmem:[#allocation2 + $0x48] sm:$0xff] %v573
      %610 = vst [vmem:[#allocation2 + $0x50] sm:$0xff] %v574
      %611 = vst [vmem:[#allocation2 + $0x58] sm:$0xff] %v575
      %612 = vst [vmem:[#allocation2 + $0x60] sm:$0xff] %v576
      %613 = vst [vmem:[#allocation2 + $0x68] sm:$0xff] %v577
      %614 = vst [vmem:[#allocation2 + $0x70] sm:$0xff] %v578
      %615 = vst [vmem:[#allocation2 + $0x78] sm:$0xff] %v579
      %616 = vst [vmem:[#allocation2 + $0x80] sm:$0xff] %v580
      %617 = vst [vmem:[#allocation2 + $0x88] sm:$0xff] %v581
      %618 = vst [vmem:[#allocation2 + $0x90] sm:$0xff] %v582
      %619 = vst [vmem:[#allocation2 + $0x98] sm:$0xff] %v583
      %620 = vst [vmem:[#allocation2 + $0xa0] sm:$0xff] %v584
      %621 = vst [vmem:[#allocation2 + $0xa8] sm:$0xff] %v585
      %622 = vst [vmem:[#allocation2 + $0xb0] sm:$0xff] %v586
      %623 = vst [vmem:[#allocation2 + $0xb8] sm:$0xff] %v587
      %624 = vst [vmem:[#allocation2 + $0xc0] sm:$0xff] %v588
      %625 = vst [vmem:[#allocation2 + $0xc8] sm:$0xff] %v589
      %626 = vst [vmem:[#allocation2 + $0xd0] sm:$0xff] %v590
      %627 = vst [vmem:[#allocation2 + $0xd8] sm:$0xff] %v591
      %628 = vst [vmem:[#allocation2 + $0xe0] sm:$0xff] %v592
      %629 = vst [vmem:[#allocation2 + $0xe8] sm:$0xff] %v593
      %630 = vst [vmem:[#allocation2 + $0xf0] sm:$0xff] %v594
      %631 = vst [vmem:[#allocation2 + $0xf8] sm:$0xff] %v595
      %632 = vst [vmem:[#allocation2 + $0x100] sm:$0xff] %v596
      %633 = vst [vmem:[#allocation2 + $0x108] sm:$0xff] %v597
      %v634 = vld [vmem:[#allocation2 + $0xf] sm:$0xff]
      %v635 = vld [vmem:[#allocation2 + $0x17] sm:$0xff]
      %v636 = vld [vmem:[#allocation2 + $0x1f] sm:$0xff]
      %v637 = vld [vmem:[#allocation2 + $0x27] sm:$0xff]
      %v638 = vld [vmem:[#allocation2 + $0x2f] sm:$0xff]
      %v639 = vld [vmem:[#allocation2 + $0x37] sm:$0xff]
      %v640 = vld [vmem:[#allocation2 + $0x3f] sm:$0xff]
      %v641 = vld [vmem:[#allocation2 + $0x47] sm:$0xff]
      %v642 = vld [vmem:[#allocation2 + $0x4f] sm:$0xff]
      %v643 = vld [vmem:[#allocation2 + $0x57] sm:$0xff]
      %v644 = vld [vmem:[#allocation2 + $0x5f] sm:$0xff]
      %v645 = vld [vmem:[#allocation2 + $0x67] sm:$0xff]
      %v646 = vld [vmem:[#allocation2 + $0x6f] sm:$0xff]
      %v647 = vld [vmem:[#allocation2 + $0x77] sm:$0xff]
      %v648 = vld [vmem:[#allocation2 + $0x7f] sm:$0xff]
      %v649 = vld [vmem:[#allocation2 + $0x87] sm:$0xff]
      %v650 = vld [vmem:[#allocation2 + $0x8f] sm:$0xff]
      %v651 = vld [vmem:[#allocation2 + $0x97] sm:$0xff]
      %v652 = vld [vmem:[#allocation2 + $0x9f] sm:$0xff]
      %v653 = vld [vmem:[#allocation2 + $0xa7] sm:$0xff]
      %v654 = vld [vmem:[#allocation2 + $0xaf] sm:$0xff]
      %v655 = vld [vmem:[#allocation2 + $0xb7] sm:$0xff]
      %v656 = vld [vmem:[#allocation2 + $0xbf] sm:$0xff]
      %v657 = vld [vmem:[#allocation2 + $0xc7] sm:$0xff]
      %v658 = vld [vmem:[#allocation2 + $0xcf] sm:$0xff]
      %v659 = vld [vmem:[#allocation2 + $0xd7] sm:$0xff]
      %v660 = vld [vmem:[#allocation2 + $0xdf] sm:$0xff]
      %v661 = vld [vmem:[#allocation2 + $0xe7] sm:$0xff]
      %v662 = vld [vmem:[#allocation2 + $0xef] sm:$0xff]
      %v663 = vld [vmem:[#allocation2 + $0xf7] sm:$0xff]
      %v664 = vld [vmem:[#allocation2 + $0xff] sm:$0xff]
      %v665 = vld [vmem:[#allocation2 + $0x107] sm:$0xff]
      %667 = vset.pattern.permute.xlu0 0
      %668 = vperm.xlu0 %667, %v254
      %v669 = vpop.permute.xlu0 %668
      %672 = vset.pattern.permute.xlu0 0
      %673 = vperm.xlu0 %672, %v255
      %v674 = vpop.permute.xlu0 %673
      %677 = vset.pattern.permute.xlu0 0
      %678 = vperm.xlu0 %677, %v256
      %v679 = vpop.permute.xlu0 %678
      %682 = vset.pattern.permute.xlu0 0
      %683 = vperm.xlu0 %682, %v257
      %v684 = vpop.permute.xlu0 %683
      %687 = vset.pattern.permute.xlu0 0
      %688 = vperm.xlu0 %687, %v258
      %v689 = vpop.permute.xlu0 %688
      %692 = vset.pattern.permute.xlu0 0
      %693 = vperm.xlu0 %692, %v259
      %v694 = vpop.permute.xlu0 %693
      %697 = vset.pattern.permute.xlu0 0
      %698 = vperm.xlu0 %697, %v260
      %v699 = vpop.permute.xlu0 %698
      %702 = vset.pattern.permute.xlu0 0
      %703 = vperm.xlu0 %702, %v261
      %v704 = vpop.permute.xlu0 %703
      %707 = vset.pattern.permute.xlu0 0
      %708 = vperm.xlu0 %707, %v262
      %v709 = vpop.permute.xlu0 %708
      %712 = vset.pattern.permute.xlu0 0
      %713 = vperm.xlu0 %712, %v263
      %v714 = vpop.permute.xlu0 %713
      %717 = vset.pattern.permute.xlu0 0
      %718 = vperm.xlu0 %717, %v264
      %v719 = vpop.permute.xlu0 %718
      %722 = vset.pattern.permute.xlu0 0
      %723 = vperm.xlu0 %722, %v265
      %v724 = vpop.permute.xlu0 %723
      %727 = vset.pattern.permute.xlu0 0
      %728 = vperm.xlu0 %727, %v266
      %v729 = vpop.permute.xlu0 %728
      %732 = vset.pattern.permute.xlu0 0
      %733 = vperm.xlu0 %732, %v267
      %v734 = vpop.permute.xlu0 %733
      %737 = vset.pattern.permute.xlu0 0
      %738 = vperm.xlu0 %737, %v268
      %v739 = vpop.permute.xlu0 %738
      %742 = vset.pattern.permute.xlu0 0
      %743 = vperm.xlu0 %742, %v269
      %v744 = vpop.permute.xlu0 %743
      %747 = vset.pattern.permute.xlu0 0
      %748 = vperm.xlu0 %747, %v270
      %v749 = vpop.permute.xlu0 %748
      %752 = vset.pattern.permute.xlu0 0
      %753 = vperm.xlu0 %752, %v271
      %v754 = vpop.permute.xlu0 %753
      %757 = vset.pattern.permute.xlu0 0
      %758 = vperm.xlu0 %757, %v272
      %v759 = vpop.permute.xlu0 %758
      %762 = vset.pattern.permute.xlu0 0
      %763 = vperm.xlu0 %762, %v273
      %v764 = vpop.permute.xlu0 %763
      %767 = vset.pattern.permute.xlu0 0
      %768 = vperm.xlu0 %767, %v274
      %v769 = vpop.permute.xlu0 %768
      %772 = vset.pattern.permute.xlu0 0
      %773 = vperm.xlu0 %772, %v275
      %v774 = vpop.permute.xlu0 %773
      %777 = vset.pattern.permute.xlu0 0
      %778 = vperm.xlu0 %777, %v276
      %v779 = vpop.permute.xlu0 %778
      %782 = vset.pattern.permute.xlu0 0
      %783 = vperm.xlu0 %782, %v277
      %v784 = vpop.permute.xlu0 %783
      %787 = vset.pattern.permute.xlu0 0
      %788 = vperm.xlu0 %787, %v278
      %v789 = vpop.permute.xlu0 %788
      %792 = vset.pattern.permute.xlu0 0
      %793 = vperm.xlu0 %792, %v279
      %v794 = vpop.permute.xlu0 %793
      %797 = vset.pattern.permute.xlu0 0
      %798 = vperm.xlu0 %797, %v280
      %v799 = vpop.permute.xlu0 %798
      %802 = vset.pattern.permute.xlu0 0
      %803 = vperm.xlu0 %802, %v281
      %v804 = vpop.permute.xlu0 %803
      %807 = vset.pattern.permute.xlu0 0
      %808 = vperm.xlu0 %807, %v282
      %v809 = vpop.permute.xlu0 %808
      %812 = vset.pattern.permute.xlu0 0
      %813 = vperm.xlu0 %812, %v283
      %v814 = vpop.permute.xlu0 %813
      %817 = vset.pattern.permute.xlu0 0
      %818 = vperm.xlu0 %817, %v284
      %v819 = vpop.permute.xlu0 %818
      %822 = vset.pattern.permute.xlu0 0
      %823 = vperm.xlu0 %822, %v285
      %v824 = vpop.permute.xlu0 %823
      %v826 = vmul.f32 %v634, %v669
      %v827 = vmul.f32 %v635, %v674
      %v828 = vmul.f32 %v636, %v679
      %v829 = vmul.f32 %v637, %v684
      %v830 = vmul.f32 %v638, %v689
      %v831 = vmul.f32 %v639, %v694
      %v832 = vmul.f32 %v640, %v699
      %v833 = vmul.f32 %v641, %v704
      %v834 = vmul.f32 %v642, %v709
      %v835 = vmul.f32 %v643, %v714
      %v836 = vmul.f32 %v644, %v719
      %v837 = vmul.f32 %v645, %v724
      %v838 = vmul.f32 %v646, %v729
      %v839 = vmul.f32 %v647, %v734
      %v840 = vmul.f32 %v648, %v739
      %v841 = vmul.f32 %v649, %v744
      %v842 = vmul.f32 %v650, %v749
      %v843 = vmul.f32 %v651, %v754
      %v844 = vmul.f32 %v652, %v759
      %v845 = vmul.f32 %v653, %v764
      %v846 = vmul.f32 %v654, %v769
      %v847 = vmul.f32 %v655, %v774
      %v848 = vmul.f32 %v656, %v779
      %v849 = vmul.f32 %v657, %v784
      %v850 = vmul.f32 %v658, %v789
      %v851 = vmul.f32 %v659, %v794
      %v852 = vmul.f32 %v660, %v799
      %v853 = vmul.f32 %v661, %v804
      %v854 = vmul.f32 %v662, %v809
      %v855 = vmul.f32 %v663, %v814
      %v856 = vmul.f32 %v664, %v819
      %v857 = vmul.f32 %v665, %v824
      %v858 = vld [vmem:[#allocation2 + $0x11] sm:$0xff]
      %v859 = vld [vmem:[#allocation2 + $0x19] sm:$0xff]
      %v860 = vld [vmem:[#allocation2 + $0x21] sm:$0xff]
      %v861 = vld [vmem:[#allocation2 + $0x29] sm:$0xff]
      %v862 = vld [vmem:[#allocation2 + $0x31] sm:$0xff]
      %v863 = vld [vmem:[#allocation2 + $0x39] sm:$0xff]
      %v864 = vld [vmem:[#allocation2 + $0x41] sm:$0xff]
      %v865 = vld [vmem:[#allocation2 + $0x49] sm:$0xff]
      %v866 = vld [vmem:[#allocation2 + $0x51] sm:$0xff]
      %v867 = vld [vmem:[#allocation2 + $0x59] sm:$0xff]
      %v868 = vld [vmem:[#allocation2 + $0x61] sm:$0xff]
      %v869 = vld [vmem:[#allocation2 + $0x69] sm:$0xff]
      %v870 = vld [vmem:[#allocation2 + $0x71] sm:$0xff]
      %v871 = vld [vmem:[#allocation2 + $0x79] sm:$0xff]
      %v872 = vld [vmem:[#allocation2 + $0x81] sm:$0xff]
      %v873 = vld [vmem:[#allocation2 + $0x89] sm:$0xff]
      %v874 = vld [vmem:[#allocation2 + $0x91] sm:$0xff]
      %v875 = vld [vmem:[#allocation2 + $0x99] sm:$0xff]
      %v876 = vld [vmem:[#allocation2 + $0xa1] sm:$0xff]
      %v877 = vld [vmem:[#allocation2 + $0xa9] sm:$0xff]
      %v878 = vld [vmem:[#allocation2 + $0xb1] sm:$0xff]
      %v879 = vld [vmem:[#allocation2 + $0xb9] sm:$0xff]
      %v880 = vld [vmem:[#allocation2 + $0xc1] sm:$0xff]
      %v881 = vld [vmem:[#allocation2 + $0xc9] sm:$0xff]
      %v882 = vld [vmem:[#allocation2 + $0xd1] sm:$0xff]
      %v883 = vld [vmem:[#allocation2 + $0xd9] sm:$0xff]
      %v884 = vld [vmem:[#allocation2 + $0xe1] sm:$0xff]
      %v885 = vld [vmem:[#allocation2 + $0xe9] sm:$0xff]
      %v886 = vld [vmem:[#allocation2 + $0xf1] sm:$0xff]
      %v887 = vld [vmem:[#allocation2 + $0xf9] sm:$0xff]
      %v888 = vld [vmem:[#allocation2 + $0x101] sm:$0xff]
      %v889 = vld [vmem:[#allocation2 + $0x109] sm:$0xff]
      %890 = vset.pattern.permute.xlu0 1
      %891 = vperm.xlu0 %890, %v254
      %v892 = vpop.permute.xlu0 %891
      %894 = vset.pattern.permute.xlu0 1
      %895 = vperm.xlu0 %894, %v255
      %v896 = vpop.permute.xlu0 %895
      %898 = vset.pattern.permute.xlu0 1
      %899 = vperm.xlu0 %898, %v256
      %v900 = vpop.permute.xlu0 %899
      %902 = vset.pattern.permute.xlu0 1
      %903 = vperm.xlu0 %902, %v257
      %v904 = vpop.permute.xlu0 %903
      %906 = vset.pattern.permute.xlu0 1
      %907 = vperm.xlu0 %906, %v258
      %v908 = vpop.permute.xlu0 %907
      %910 = vset.pattern.permute.xlu0 1
      %911 = vperm.xlu0 %910, %v259
      %v912 = vpop.permute.xlu0 %911
      %914 = vset.pattern.permute.xlu0 1
      %915 = vperm.xlu0 %914, %v260
      %v916 = vpop.permute.xlu0 %915
      %918 = vset.pattern.permute.xlu0 1
      %919 = vperm.xlu0 %918, %v261
      %v920 = vpop.permute.xlu0 %919
      %922 = vset.pattern.permute.xlu0 1
      %923 = vperm.xlu0 %922, %v262
      %v924 = vpop.permute.xlu0 %923
      %926 = vset.pattern.permute.xlu0 1
      %927 = vperm.xlu0 %926, %v263
      %v928 = vpop.permute.xlu0 %927
      %930 = vset.pattern.permute.xlu0 1
      %931 = vperm.xlu0 %930, %v264
      %v932 = vpop.permute.xlu0 %931
      %934 = vset.pattern.permute.xlu0 1
      %935 = vperm.xlu0 %934, %v265
      %v936 = vpop.permute.xlu0 %935
      %938 = vset.pattern.permute.xlu0 1
      %939 = vperm.xlu0 %938, %v266
      %v940 = vpop.permute.xlu0 %939
      %942 = vset.pattern.permute.xlu0 1
      %943 = vperm.xlu0 %942, %v267
      %v944 = vpop.permute.xlu0 %943
      %946 = vset.pattern.permute.xlu0 1
      %947 = vperm.xlu0 %946, %v268
      %v948 = vpop.permute.xlu0 %947
      %950 = vset.pattern.permute.xlu0 1
      %951 = vperm.xlu0 %950, %v269
      %v952 = vpop.permute.xlu0 %951
      %954 = vset.pattern.permute.xlu0 1
      %955 = vperm.xlu0 %954, %v270
      %v956 = vpop.permute.xlu0 %955
      %958 = vset.pattern.permute.xlu0 1
      %959 = vperm.xlu0 %958, %v271
      %v960 = vpop.permute.xlu0 %959
      %962 = vset.pattern.permute.xlu0 1
      %963 = vperm.xlu0 %962, %v272
      %v964 = vpop.permute.xlu0 %963
      %966 = vset.pattern.permute.xlu0 1
      %967 = vperm.xlu0 %966, %v273
      %v968 = vpop.permute.xlu0 %967
      %970 = vset.pattern.permute.xlu0 1
      %971 = vperm.xlu0 %970, %v274
      %v972 = vpop.permute.xlu0 %971
      %974 = vset.pattern.permute.xlu0 1
      %975 = vperm.xlu0 %974, %v275
      %v976 = vpop.permute.xlu0 %975
      %978 = vset.pattern.permute.xlu0 1
      %979 = vperm.xlu0 %978, %v276
      %v980 = vpop.permute.xlu0 %979
      %982 = vset.pattern.permute.xlu0 1
      %983 = vperm.xlu0 %982, %v277
      %v984 = vpop.permute.xlu0 %983
      %986 = vset.pattern.permute.xlu0 1
      %987 = vperm.xlu0 %986, %v278
      %v988 = vpop.permute.xlu0 %987
      %990 = vset.pattern.permute.xlu0 1
      %991 = vperm.xlu0 %990, %v279
      %v992 = vpop.permute.xlu0 %991
      %994 = vset.pattern.permute.xlu0 1
      %995 = vperm.xlu0 %994, %v280
      %v996 = vpop.permute.xlu0 %995
      %998 = vset.pattern.permute.xlu0 1
      %999 = vperm.xlu0 %998, %v281
      %v1000 = vpop.permute.xlu0 %999
      %1002 = vset.pattern.permute.xlu0 1
      %1003 = vperm.xlu0 %1002, %v282
      %v1004 = vpop.permute.xlu0 %1003
      %1006 = vset.pattern.permute.xlu0 1
      %1007 = vperm.xlu0 %1006, %v283
      %v1008 = vpop.permute.xlu0 %1007
      %1010 = vset.pattern.permute.xlu0 1
      %1011 = vperm.xlu0 %1010, %v284
      %v1012 = vpop.permute.xlu0 %1011
      %1014 = vset.pattern.permute.xlu0 1
      %1015 = vperm.xlu0 %1014, %v285
      %v1016 = vpop.permute.xlu0 %1015
      %v1018 = vmul.f32 %v858, %v892
      %v1019 = vmul.f32 %v859, %v896
      %v1020 = vmul.f32 %v860, %v900
      %v1021 = vmul.f32 %v861, %v904
      %v1022 = vmul.f32 %v862, %v908
      %v1023 = vmul.f32 %v863, %v912
      %v1024 = vmul.f32 %v864, %v916
      %v1025 = vmul.f32 %v865, %v920
      %v1026 = vmul.f32 %v866, %v924
      %v1027 = vmul.f32 %v867, %v928
      %v1028 = vmul.f32 %v868, %v932
      %v1029 = vmul.f32 %v869, %v936
      %v1030 = vmul.f32 %v870, %v940
      %v1031 = vmul.f32 %v871, %v944
      %v1032 = vmul.f32 %v872, %v948
      %v1033 = vmul.f32 %v873, %v952
      %v1034 = vmul.f32 %v874, %v956
      %v1035 = vmul.f32 %v875, %v960
      %v1036 = vmul.f32 %v876, %v964
      %v1037 = vmul.f32 %v877, %v968
      %v1038 = vmul.f32 %v878, %v972
      %v1039 = vmul.f32 %v879, %v976
      %v1040 = vmul.f32 %v880, %v980
      %v1041 = vmul.f32 %v881, %v984
      %v1042 = vmul.f32 %v882, %v988
      %v1043 = vmul.f32 %v883, %v992
      %v1044 = vmul.f32 %v884, %v996
      %v1045 = vmul.f32 %v885, %v1000
      %v1046 = vmul.f32 %v886, %v1004
      %v1047 = vmul.f32 %v887, %v1008
      %v1048 = vmul.f32 %v888, %v1012
      %v1049 = vmul.f32 %v889, %v1016
      %v1050 = vperm.slane %v252, 0
      %v1051 = vmul.f32 %v826, %v1050
      %v1052 = vmul.f32 %v827, %v1050
      %v1053 = vmul.f32 %v828, %v1050
      %v1054 = vmul.f32 %v829, %v1050
      %v1055 = vmul.f32 %v830, %v1050
      %v1056 = vmul.f32 %v831, %v1050
      %v1057 = vmul.f32 %v832, %v1050
      %v1058 = vmul.f32 %v833, %v1050
      %v1059 = vmul.f32 %v834, %v1050
      %v1060 = vmul.f32 %v835, %v1050
      %v1061 = vmul.f32 %v836, %v1050
      %v1062 = vmul.f32 %v837, %v1050
      %v1063 = vmul.f32 %v838, %v1050
      %v1064 = vmul.f32 %v839, %v1050
      %v1065 = vmul.f32 %v840, %v1050
      %v1066 = vmul.f32 %v841, %v1050
      %v1067 = vmul.f32 %v842, %v1050
      %v1068 = vmul.f32 %v843, %v1050
      %v1069 = vmul.f32 %v844, %v1050
      %v1070 = vmul.f32 %v845, %v1050
      %v1071 = vmul.f32 %v846, %v1050
      %v1072 = vmul.f32 %v847, %v1050
      %v1073 = vmul.f32 %v848, %v1050
      %v1074 = vmul.f32 %v849, %v1050
      %v1075 = vmul.f32 %v850, %v1050
      %v1076 = vmul.f32 %v851, %v1050
      %v1077 = vmul.f32 %v852, %v1050
      %v1078 = vmul.f32 %v853, %v1050
      %v1079 = vmul.f32 %v854, %v1050
      %v1080 = vmul.f32 %v855, %v1050
      %v1081 = vmul.f32 %v856, %v1050
      %v1082 = vmul.f32 %v857, %v1050
      %v1083 = vperm.slane %v252, 1
      %v1084 = vmul.f32 %v566, %v1083
      %v1085 = vmul.f32 %v567, %v1083
      %v1086 = vmul.f32 %v568, %v1083
      %v1087 = vmul.f32 %v569, %v1083
      %v1088 = vmul.f32 %v570, %v1083
      %v1089 = vmul.f32 %v571, %v1083
      %v1090 = vmul.f32 %v572, %v1083
      %v1091 = vmul.f32 %v573, %v1083
      %v1092 = vmul.f32 %v574, %v1083
      %v1093 = vmul.f32 %v575, %v1083
      %v1094 = vmul.f32 %v576, %v1083
      %v1095 = vmul.f32 %v577, %v1083
      %v1096 = vmul.f32 %v578, %v1083
      %v1097 = vmul.f32 %v579, %v1083
      %v1098 = vmul.f32 %v580, %v1083
      %v1099 = vmul.f32 %v581, %v1083
      %v1100 = vmul.f32 %v582, %v1083
      %v1101 = vmul.f32 %v583, %v1083
      %v1102 = vmul.f32 %v584, %v1083
      %v1103 = vmul.f32 %v585, %v1083
      %v1104 = vmul.f32 %v586, %v1083
      %v1105 = vmul.f32 %v587, %v1083
      %v1106 = vmul.f32 %v588, %v1083
      %v1107 = vmul.f32 %v589, %v1083
      %v1108 = vmul.f32 %v590, %v1083
      %v1109 = vmul.f32 %v591, %v1083
      %v1110 = vmul.f32 %v592, %v1083
      %v1111 = vmul.f32 %v593, %v1083
      %v1112 = vmul.f32 %v594, %v1083
      %v1113 = vmul.f32 %v595, %v1083
      %v1114 = vmul.f32 %v596, %v1083
      %v1115 = vmul.f32 %v597, %v1083
      %v1116 = vadd.f32 %v1051, %v1084
      %v1117 = vadd.f32 %v1052, %v1085
      %v1118 = vadd.f32 %v1053, %v1086
      %v1119 = vadd.f32 %v1054, %v1087
      %v1120 = vadd.f32 %v1055, %v1088
      %v1121 = vadd.f32 %v1056, %v1089
      %v1122 = vadd.f32 %v1057, %v1090
      %v1123 = vadd.f32 %v1058, %v1091
      %v1124 = vadd.f32 %v1059, %v1092
      %v1125 = vadd.f32 %v1060, %v1093
      %v1126 = vadd.f32 %v1061, %v1094
      %v1127 = vadd.f32 %v1062, %v1095
      %v1128 = vadd.f32 %v1063, %v1096
      %v1129 = vadd.f32 %v1064, %v1097
      %v1130 = vadd.f32 %v1065, %v1098
      %v1131 = vadd.f32 %v1066, %v1099
      %v1132 = vadd.f32 %v1067, %v1100
      %v1133 = vadd.f32 %v1068, %v1101
      %v1134 = vadd.f32 %v1069, %v1102
      %v1135 = vadd.f32 %v1070, %v1103
      %v1136 = vadd.f32 %v1071, %v1104
      %v1137 = vadd.f32 %v1072, %v1105
      %v1138 = vadd.f32 %v1073, %v1106
      %v1139 = vadd.f32 %v1074, %v1107
      %v1140 = vadd.f32 %v1075, %v1108
      %v1141 = vadd.f32 %v1076, %v1109
      %v1142 = vadd.f32 %v1077, %v1110
      %v1143 = vadd.f32 %v1078, %v1111
      %v1144 = vadd.f32 %v1079, %v1112
      %v1145 = vadd.f32 %v1080, %v1113
      %v1146 = vadd.f32 %v1081, %v1114
      %v1147 = vadd.f32 %v1082, %v1115
      %v1148 = vperm.slane %v252, 2
      %v1149 = vmul.f32 %v1018, %v1148
      %v1150 = vmul.f32 %v1019, %v1148
      %v1151 = vmul.f32 %v1020, %v1148
      %v1152 = vmul.f32 %v1021, %v1148
      %v1153 = vmul.f32 %v1022, %v1148
      %v1154 = vmul.f32 %v1023, %v1148
      %v1155 = vmul.f32 %v1024, %v1148
      %v1156 = vmul.f32 %v1025, %v1148
      %v1157 = vmul.f32 %v1026, %v1148
      %v1158 = vmul.f32 %v1027, %v1148
      %v1159 = vmul.f32 %v1028, %v1148
      %v1160 = vmul.f32 %v1029, %v1148
      %v1161 = vmul.f32 %v1030, %v1148
      %v1162 = vmul.f32 %v1031, %v1148
      %v1163 = vmul.f32 %v1032, %v1148
      %v1164 = vmul.f32 %v1033, %v1148
      %v1165 = vmul.f32 %v1034, %v1148
      %v1166 = vmul.f32 %v1035, %v1148
      %v1167 = vmul.f32 %v1036, %v1148
      %v1168 = vmul.f32 %v1037, %v1148
      %v1169 = vmul.f32 %v1038, %v1148
      %v1170 = vmul.f32 %v1039, %v1148
      %v1171 = vmul.f32 %v1040, %v1148
      %v1172 = vmul.f32 %v1041, %v1148
      %v1173 = vmul.f32 %v1042, %v1148
      %v1174 = vmul.f32 %v1043, %v1148
      %v1175 = vmul.f32 %v1044, %v1148
      %v1176 = vmul.f32 %v1045, %v1148
      %v1177 = vmul.f32 %v1046, %v1148
      %v1178 = vmul.f32 %v1047, %v1148
      %v1179 = vmul.f32 %v1048, %v1148
      %v1180 = vmul.f32 %v1049, %v1148
      %v1181 = vadd.f32 %v1116, %v1149
      %v1182 = vadd.f32 %v1117, %v1150
      %v1183 = vadd.f32 %v1118, %v1151
      %v1184 = vadd.f32 %v1119, %v1152
      %v1185 = vadd.f32 %v1120, %v1153
      %v1186 = vadd.f32 %v1121, %v1154
      %v1187 = vadd.f32 %v1122, %v1155
      %v1188 = vadd.f32 %v1123, %v1156
      %v1189 = vadd.f32 %v1124, %v1157
      %v1190 = vadd.f32 %v1125, %v1158
      %v1191 = vadd.f32 %v1126, %v1159
      %v1192 = vadd.f32 %v1127, %v1160
      %v1193 = vadd.f32 %v1128, %v1161
      %v1194 = vadd.f32 %v1129, %v1162
      %v1195 = vadd.f32 %v1130, %v1163
      %v1196 = vadd.f32 %v1131, %v1164
      %v1197 = vadd.f32 %v1132, %v1165
      %v1198 = vadd.f32 %v1133, %v1166
      %v1199 = vadd.f32 %v1134, %v1167
      %v1200 = vadd.f32 %v1135, %v1168
      %v1201 = vadd.f32 %v1136, %v1169
      %v1202 = vadd.f32 %v1137, %v1170
      %v1203 = vadd.f32 %v1138, %v1171
      %v1204 = vadd.f32 %v1139, %v1172
      %v1205 = vadd.f32 %v1140, %v1173
      %v1206 = vadd.f32 %v1141, %v1174
      %v1207 = vadd.f32 %v1142, %v1175
      %v1208 = vadd.f32 %v1143, %v1176
      %v1209 = vadd.f32 %v1144, %v1177
      %v1210 = vadd.f32 %v1145, %v1178
      %v1211 = vadd.f32 %v1146, %v1179
      %v1212 = vadd.f32 %v1147, %v1180
      %v1213 = vperm.slane %v252, 3
      %v1214 = vmul.f32 %v826, %v1213
      %v1215 = vmul.f32 %v827, %v1213
      %v1216 = vmul.f32 %v828, %v1213
      %v1217 = vmul.f32 %v829, %v1213
      %v1218 = vmul.f32 %v830, %v1213
      %v1219 = vmul.f32 %v831, %v1213
      %v1220 = vmul.f32 %v832, %v1213
      %v1221 = vmul.f32 %v833, %v1213
      %v1222 = vmul.f32 %v834, %v1213
      %v1223 = vmul.f32 %v835, %v1213
      %v1224 = vmul.f32 %v836, %v1213
      %v1225 = vmul.f32 %v837, %v1213
      %v1226 = vmul.f32 %v838, %v1213
      %v1227 = vmul.f32 %v839, %v1213
      %v1228 = vmul.f32 %v840, %v1213
      %v1229 = vmul.f32 %v841, %v1213
      %v1230 = vmul.f32 %v842, %v1213
      %v1231 = vmul.f32 %v843, %v1213
      %v1232 = vmul.f32 %v844, %v1213
      %v1233 = vmul.f32 %v845, %v1213
      %v1234 = vmul.f32 %v846, %v1213
      %v1235 = vmul.f32 %v847, %v1213
      %v1236 = vmul.f32 %v848, %v1213
      %v1237 = vmul.f32 %v849, %v1213
      %v1238 = vmul.f32 %v850, %v1213
      %v1239 = vmul.f32 %v851, %v1213
      %v1240 = vmul.f32 %v852, %v1213
      %v1241 = vmul.f32 %v853, %v1213
      %v1242 = vmul.f32 %v854, %v1213
      %v1243 = vmul.f32 %v855, %v1213
      %v1244 = vmul.f32 %v856, %v1213
      %v1245 = vmul.f32 %v857, %v1213
      %v1246 = vperm.slane %v252, 4
      %v1247 = vmul.f32 %v566, %v1246
      %v1248 = vmul.f32 %v567, %v1246
      %v1249 = vmul.f32 %v568, %v1246
      %v1250 = vmul.f32 %v569, %v1246
      %v1251 = vmul.f32 %v570, %v1246
      %v1252 = vmul.f32 %v571, %v1246
      %v1253 = vmul.f32 %v572, %v1246
      %v1254 = vmul.f32 %v573, %v1246
      %v1255 = vmul.f32 %v574, %v1246
      %v1256 = vmul.f32 %v575, %v1246
      %v1257 = vmul.f32 %v576, %v1246
      %v1258 = vmul.f32 %v577, %v1246
      %v1259 = vmul.f32 %v578, %v1246
      %v1260 = vmul.f32 %v579, %v1246
      %v1261 = vmul.f32 %v580, %v1246
      %v1262 = vmul.f32 %v581, %v1246
      %v1263 = vmul.f32 %v582, %v1246
      %v1264 = vmul.f32 %v583, %v1246
      %v1265 = vmul.f32 %v584, %v1246
      %v1266 = vmul.f32 %v585, %v1246
      %v1267 = vmul.f32 %v586, %v1246
      %v1268 = vmul.f32 %v587, %v1246
      %v1269 = vmul.f32 %v588, %v1246
      %v1270 = vmul.f32 %v589, %v1246
      %v1271 = vmul.f32 %v590, %v1246
      %v1272 = vmul.f32 %v591, %v1246
      %v1273 = vmul.f32 %v592, %v1246
      %v1274 = vmul.f32 %v593, %v1246
      %v1275 = vmul.f32 %v594, %v1246
      %v1276 = vmul.f32 %v595, %v1246
      %v1277 = vmul.f32 %v596, %v1246
      %v1278 = vmul.f32 %v597, %v1246
      %v1279 = vadd.f32 %v1214, %v1247
      %v1280 = vadd.f32 %v1215, %v1248
      %v1281 = vadd.f32 %v1216, %v1249
      %v1282 = vadd.f32 %v1217, %v1250
      %v1283 = vadd.f32 %v1218, %v1251
      %v1284 = vadd.f32 %v1219, %v1252
      %v1285 = vadd.f32 %v1220, %v1253
      %v1286 = vadd.f32 %v1221, %v1254
      %v1287 = vadd.f32 %v1222, %v1255
      %v1288 = vadd.f32 %v1223, %v1256
      %v1289 = vadd.f32 %v1224, %v1257
      %v1290 = vadd.f32 %v1225, %v1258
      %v1291 = vadd.f32 %v1226, %v1259
      %v1292 = vadd.f32 %v1227, %v1260
      %v1293 = vadd.f32 %v1228, %v1261
      %v1294 = vadd.f32 %v1229, %v1262
      %v1295 = vadd.f32 %v1230, %v1263
      %v1296 = vadd.f32 %v1231, %v1264
      %v1297 = vadd.f32 %v1232, %v1265
      %v1298 = vadd.f32 %v1233, %v1266
      %v1299 = vadd.f32 %v1234, %v1267
      %v1300 = vadd.f32 %v1235, %v1268
      %v1301 = vadd.f32 %v1236, %v1269
      %v1302 = vadd.f32 %v1237, %v1270
      %v1303 = vadd.f32 %v1238, %v1271
      %v1304 = vadd.f32 %v1239, %v1272
      %v1305 = vadd.f32 %v1240, %v1273
      %v1306 = vadd.f32 %v1241, %v1274
      %v1307 = vadd.f32 %v1242, %v1275
      %v1308 = vadd.f32 %v1243, %v1276
      %v1309 = vadd.f32 %v1244, %v1277
      %v1310 = vadd.f32 %v1245, %v1278
      %v1311 = vperm.slane %v252, 5
      %v1312 = vmul.f32 %v1018, %v1311
      %v1313 = vmul.f32 %v1019, %v1311
      %v1314 = vmul.f32 %v1020, %v1311
      %v1315 = vmul.f32 %v1021, %v1311
      %v1316 = vmul.f32 %v1022, %v1311
      %v1317 = vmul.f32 %v1023, %v1311
      %v1318 = vmul.f32 %v1024, %v1311
      %v1319 = vmul.f32 %v1025, %v1311
      %v1320 = vmul.f32 %v1026, %v1311
      %v1321 = vmul.f32 %v1027, %v1311
      %v1322 = vmul.f32 %v1028, %v1311
      %v1323 = vmul.f32 %v1029, %v1311
      %v1324 = vmul.f32 %v1030, %v1311
      %v1325 = vmul.f32 %v1031, %v1311
      %v1326 = vmul.f32 %v1032, %v1311
      %v1327 = vmul.f32 %v1033, %v1311
      %v1328 = vmul.f32 %v1034, %v1311
      %v1329 = vmul.f32 %v1035, %v1311
      %v1330 = vmul.f32 %v1036, %v1311
      %v1331 = vmul.f32 %v1037, %v1311
      %v1332 = vmul.f32 %v1038, %v1311
      %v1333 = vmul.f32 %v1039, %v1311
      %v1334 = vmul.f32 %v1040, %v1311
      %v1335 = vmul.f32 %v1041, %v1311
      %v1336 = vmul.f32 %v1042, %v1311
      %v1337 = vmul.f32 %v1043, %v1311
      %v1338 = vmul.f32 %v1044, %v1311
      %v1339 = vmul.f32 %v1045, %v1311
      %v1340 = vmul.f32 %v1046, %v1311
      %v1341 = vmul.f32 %v1047, %v1311
      %v1342 = vmul.f32 %v1048, %v1311
      %v1343 = vmul.f32 %v1049, %v1311
      %v1344 = vadd.f32 %v1279, %v1312
      %v1345 = vadd.f32 %v1280, %v1313
      %v1346 = vadd.f32 %v1281, %v1314
      %v1347 = vadd.f32 %v1282, %v1315
      %v1348 = vadd.f32 %v1283, %v1316
      %v1349 = vadd.f32 %v1284, %v1317
      %v1350 = vadd.f32 %v1285, %v1318
      %v1351 = vadd.f32 %v1286, %v1319
      %v1352 = vadd.f32 %v1287, %v1320
      %v1353 = vadd.f32 %v1288, %v1321
      %v1354 = vadd.f32 %v1289, %v1322
      %v1355 = vadd.f32 %v1290, %v1323
      %v1356 = vadd.f32 %v1291, %v1324
      %v1357 = vadd.f32 %v1292, %v1325
      %v1358 = vadd.f32 %v1293, %v1326
      %v1359 = vadd.f32 %v1294, %v1327
      %v1360 = vadd.f32 %v1295, %v1328
      %v1361 = vadd.f32 %v1296, %v1329
      %v1362 = vadd.f32 %v1297, %v1330
      %v1363 = vadd.f32 %v1298, %v1331
      %v1364 = vadd.f32 %v1299, %v1332
      %v1365 = vadd.f32 %v1300, %v1333
      %v1366 = vadd.f32 %v1301, %v1334
      %v1367 = vadd.f32 %v1302, %v1335
      %v1368 = vadd.f32 %v1303, %v1336
      %v1369 = vadd.f32 %v1304, %v1337
      %v1370 = vadd.f32 %v1305, %v1338
      %v1371 = vadd.f32 %v1306, %v1339
      %v1372 = vadd.f32 %v1307, %v1340
      %v1373 = vadd.f32 %v1308, %v1341
      %v1374 = vadd.f32 %v1309, %v1342
      %v1375 = vadd.f32 %v1310, %v1343
      %v1376 = vperm.slane %v252, 6
      %v1377 = vmul.f32 %v826, %v1376
      %v1378 = vmul.f32 %v827, %v1376
      %v1379 = vmul.f32 %v828, %v1376
      %v1380 = vmul.f32 %v829, %v1376
      %v1381 = vmul.f32 %v830, %v1376
      %v1382 = vmul.f32 %v831, %v1376
      %v1383 = vmul.f32 %v832, %v1376
      %v1384 = vmul.f32 %v833, %v1376
      %v1385 = vmul.f32 %v834, %v1376
      %v1386 = vmul.f32 %v835, %v1376
      %v1387 = vmul.f32 %v836, %v1376
      %v1388 = vmul.f32 %v837, %v1376
      %v1389 = vmul.f32 %v838, %v1376
      %v1390 = vmul.f32 %v839, %v1376
      %v1391 = vmul.f32 %v840, %v1376
      %v1392 = vmul.f32 %v841, %v1376
      %v1393 = vmul.f32 %v842, %v1376
      %v1394 = vmul.f32 %v843, %v1376
      %v1395 = vmul.f32 %v844, %v1376
      %v1396 = vmul.f32 %v845, %v1376
      %v1397 = vmul.f32 %v846, %v1376
      %v1398 = vmul.f32 %v847, %v1376
      %v1399 = vmul.f32 %v848, %v1376
      %v1400 = vmul.f32 %v849, %v1376
      %v1401 = vmul.f32 %v850, %v1376
      %v1402 = vmul.f32 %v851, %v1376
      %v1403 = vmul.f32 %v852, %v1376
      %v1404 = vmul.f32 %v853, %v1376
      %v1405 = vmul.f32 %v854, %v1376
      %v1406 = vmul.f32 %v855, %v1376
      %v1407 = vmul.f32 %v856, %v1376
      %v1408 = vmul.f32 %v857, %v1376
      %v1409 = vperm.slane %v252, 7
      %v1410 = vmul.f32 %v566, %v1409
      %v1411 = vmul.f32 %v567, %v1409
      %v1412 = vmul.f32 %v568, %v1409
      %v1413 = vmul.f32 %v569, %v1409
      %v1414 = vmul.f32 %v570, %v1409
      %v1415 = vmul.f32 %v571, %v1409
      %v1416 = vmul.f32 %v572, %v1409
      %v1417 = vmul.f32 %v573, %v1409
      %v1418 = vmul.f32 %v574, %v1409
      %v1419 = vmul.f32 %v575, %v1409
      %v1420 = vmul.f32 %v576, %v1409
      %v1421 = vmul.f32 %v577, %v1409
      %v1422 = vmul.f32 %v578, %v1409
      %v1423 = vmul.f32 %v579, %v1409
      %v1424 = vmul.f32 %v580, %v1409
      %v1425 = vmul.f32 %v581, %v1409
      %v1426 = vmul.f32 %v582, %v1409
      %v1427 = vmul.f32 %v583, %v1409
      %v1428 = vmul.f32 %v584, %v1409
      %v1429 = vmul.f32 %v585, %v1409
      %v1430 = vmul.f32 %v586, %v1409
      %v1431 = vmul.f32 %v587, %v1409
      %v1432 = vmul.f32 %v588, %v1409
      %v1433 = vmul.f32 %v589, %v1409
      %v1434 = vmul.f32 %v590, %v1409
      %v1435 = vmul.f32 %v591, %v1409
      %v1436 = vmul.f32 %v592, %v1409
      %v1437 = vmul.f32 %v593, %v1409
      %v1438 = vmul.f32 %v594, %v1409
      %v1439 = vmul.f32 %v595, %v1409
      %v1440 = vmul.f32 %v596, %v1409
      %v1441 = vmul.f32 %v597, %v1409
      %v1442 = vadd.f32 %v1377, %v1410
      %v1443 = vadd.f32 %v1378, %v1411
      %v1444 = vadd.f32 %v1379, %v1412
      %v1445 = vadd.f32 %v1380, %v1413
      %v1446 = vadd.f32 %v1381, %v1414
      %v1447 = vadd.f32 %v1382, %v1415
      %v1448 = vadd.f32 %v1383, %v1416
      %v1449 = vadd.f32 %v1384, %v1417
      %v1450 = vadd.f32 %v1385, %v1418
      %v1451 = vadd.f32 %v1386, %v1419
      %v1452 = vadd.f32 %v1387, %v1420
      %v1453 = vadd.f32 %v1388, %v1421
      %v1454 = vadd.f32 %v1389, %v1422
      %v1455 = vadd.f32 %v1390, %v1423
      %v1456 = vadd.f32 %v1391, %v1424
      %v1457 = vadd.f32 %v1392, %v1425
      %v1458 = vadd.f32 %v1393, %v1426
      %v1459 = vadd.f32 %v1394, %v1427
      %v1460 = vadd.f32 %v1395, %v1428
      %v1461 = vadd.f32 %v1396, %v1429
      %v1462 = vadd.f32 %v1397, %v1430
      %v1463 = vadd.f32 %v1398, %v1431
      %v1464 = vadd.f32 %v1399, %v1432
      %v1465 = vadd.f32 %v1400, %v1433
      %v1466 = vadd.f32 %v1401, %v1434
      %v1467 = vadd.f32 %v1402, %v1435
      %v1468 = vadd.f32 %v1403, %v1436
      %v1469 = vadd.f32 %v1404, %v1437
      %v1470 = vadd.f32 %v1405, %v1438
      %v1471 = vadd.f32 %v1406, %v1439
      %v1472 = vadd.f32 %v1407, %v1440
      %v1473 = vadd.f32 %v1408, %v1441
      %v1474 = vperm.slane %v253, 0
      %v1475 = vmul.f32 %v1018, %v1474
      %v1476 = vmul.f32 %v1019, %v1474
      %v1477 = vmul.f32 %v1020, %v1474
      %v1478 = vmul.f32 %v1021, %v1474
      %v1479 = vmul.f32 %v1022, %v1474
      %v1480 = vmul.f32 %v1023, %v1474
      %v1481 = vmul.f32 %v1024, %v1474
      %v1482 = vmul.f32 %v1025, %v1474
      %v1483 = vmul.f32 %v1026, %v1474
      %v1484 = vmul.f32 %v1027, %v1474
      %v1485 = vmul.f32 %v1028, %v1474
      %v1486 = vmul.f32 %v1029, %v1474
      %v1487 = vmul.f32 %v1030, %v1474
      %v1488 = vmul.f32 %v1031, %v1474
      %v1489 = vmul.f32 %v1032, %v1474
      %v1490 = vmul.f32 %v1033, %v1474
      %v1491 = vmul.f32 %v1034, %v1474
      %v1492 = vmul.f32 %v1035, %v1474
      %v1493 = vmul.f32 %v1036, %v1474
      %v1494 = vmul.f32 %v1037, %v1474
      %v1495 = vmul.f32 %v1038, %v1474
      %v1496 = vmul.f32 %v1039, %v1474
      %v1497 = vmul.f32 %v1040, %v1474
      %v1498 = vmul.f32 %v1041, %v1474
      %v1499 = vmul.f32 %v1042, %v1474
      %v1500 = vmul.f32 %v1043, %v1474
      %v1501 = vmul.f32 %v1044, %v1474
      %v1502 = vmul.f32 %v1045, %v1474
      %v1503 = vmul.f32 %v1046, %v1474
      %v1504 = vmul.f32 %v1047, %v1474
      %v1505 = vmul.f32 %v1048, %v1474
      %v1506 = vmul.f32 %v1049, %v1474
      %v1507 = vadd.f32 %v1442, %v1475
      %v1508 = vadd.f32 %v1443, %v1476
      %v1509 = vadd.f32 %v1444, %v1477
      %v1510 = vadd.f32 %v1445, %v1478
      %v1511 = vadd.f32 %v1446, %v1479
      %v1512 = vadd.f32 %v1447, %v1480
      %v1513 = vadd.f32 %v1448, %v1481
      %v1514 = vadd.f32 %v1449, %v1482
      %v1515 = vadd.f32 %v1450, %v1483
      %v1516 = vadd.f32 %v1451, %v1484
      %v1517 = vadd.f32 %v1452, %v1485
      %v1518 = vadd.f32 %v1453, %v1486
      %v1519 = vadd.f32 %v1454, %v1487
      %v1520 = vadd.f32 %v1455, %v1488
      %v1521 = vadd.f32 %v1456, %v1489
      %v1522 = vadd.f32 %v1457, %v1490
      %v1523 = vadd.f32 %v1458, %v1491
      %v1524 = vadd.f32 %v1459, %v1492
      %v1525 = vadd.f32 %v1460, %v1493
      %v1526 = vadd.f32 %v1461, %v1494
      %v1527 = vadd.f32 %v1462, %v1495
      %v1528 = vadd.f32 %v1463, %v1496
      %v1529 = vadd.f32 %v1464, %v1497
      %v1530 = vadd.f32 %v1465, %v1498
      %v1531 = vadd.f32 %v1466, %v1499
      %v1532 = vadd.f32 %v1467, %v1500
      %v1533 = vadd.f32 %v1468, %v1501
      %v1534 = vadd.f32 %v1469, %v1502
      %v1535 = vadd.f32 %v1470, %v1503
      %v1536 = vadd.f32 %v1471, %v1504
      %v1537 = vadd.f32 %v1472, %v1505
      %v1538 = vadd.f32 %v1473, %v1506
      %1539 = vst [vmem:[#allocation2 + $0x10] sm:$0xff] %v1181
      %1540 = vst [vmem:[#allocation2 + $0x18] sm:$0xff] %v1182
      %1541 = vst [vmem:[#allocation2 + $0x20] sm:$0xff] %v1183
      %1542 = vst [vmem:[#allocation2 + $0x28] sm:$0xff] %v1184
      %1543 = vst [vmem:[#allocation2 + $0x30] sm:$0xff] %v1185
      %1544 = vst [vmem:[#allocation2 + $0x38] sm:$0xff] %v1186
      %1545 = vst [vmem:[#allocation2 + $0x40] sm:$0xff] %v1187
      %1546 = vst [vmem:[#allocation2 + $0x48] sm:$0xff] %v1188
      %1547 = vst [vmem:[#allocation2 + $0x50] sm:$0xff] %v1189
      %1548 = vst [vmem:[#allocation2 + $0x58] sm:$0xff] %v1190
      %1549 = vst [vmem:[#allocation2 + $0x60] sm:$0xff] %v1191
      %1550 = vst [vmem:[#allocation2 + $0x68] sm:$0xff] %v1192
      %1551 = vst [vmem:[#allocation2 + $0x70] sm:$0xff] %v1193
      %1552 = vst [vmem:[#allocation2 + $0x78] sm:$0xff] %v1194
      %1553 = vst [vmem:[#allocation2 + $0x80] sm:$0xff] %v1195
      %1554 = vst [vmem:[#allocation2 + $0x88] sm:$0xff] %v1196
      %1555 = vst [vmem:[#allocation2 + $0x90] sm:$0xff] %v1197
      %1556 = vst [vmem:[#allocation2 + $0x98] sm:$0xff] %v1198
      %1557 = vst [vmem:[#allocation2 + $0xa0] sm:$0xff] %v1199
      %1558 = vst [vmem:[#allocation2 + $0xa8] sm:$0xff] %v1200
      %1559 = vst [vmem:[#allocation2 + $0xb0] sm:$0xff] %v1201
      %1560 = vst [vmem:[#allocation2 + $0xb8] sm:$0xff] %v1202
      %1561 = vst [vmem:[#allocation2 + $0xc0] sm:$0xff] %v1203
      %1562 = vst [vmem:[#allocation2 + $0xc8] sm:$0xff] %v1204
      %1563 = vst [vmem:[#allocation2 + $0xd0] sm:$0xff] %v1205
      %1564 = vst [vmem:[#allocation2 + $0xd8] sm:$0xff] %v1206
      %1565 = vst [vmem:[#allocation2 + $0xe0] sm:$0xff] %v1207
      %1566 = vst [vmem:[#allocation2 + $0xe8] sm:$0xff] %v1208
      %1567 = vst [vmem:[#allocation2 + $0xf0] sm:$0xff] %v1209
      %1568 = vst [vmem:[#allocation2 + $0xf8] sm:$0xff] %v1210
      %1569 = vst [vmem:[#allocation2 + $0x100] sm:$0xff] %v1211
      %1570 = vst [vmem:[#allocation2 + $0x108] sm:$0xff] %v1212
      %v1571 = vld [vmem:[#allocation2] sm:$0xff]
      %v1572 = vld [vmem:[#allocation2 + $0x8] sm:$0xff]
      %v1573 = vld [vmem:[#allocation2 + $0x10] sm:$0xff]
      %v1574 = vld [vmem:[#allocation2 + $0x18] sm:$0xff]
      %v1575 = vld [vmem:[#allocation2 + $0x20] sm:$0xff]
      %v1576 = vld [vmem:[#allocation2 + $0x28] sm:$0xff]
      %v1577 = vld [vmem:[#allocation2 + $0x30] sm:$0xff]
      %v1578 = vld [vmem:[#allocation2 + $0x38] sm:$0xff]
      %v1579 = vld [vmem:[#allocation2 + $0x40] sm:$0xff]
      %v1580 = vld [vmem:[#allocation2 + $0x48] sm:$0xff]
      %v1581 = vld [vmem:[#allocation2 + $0x50] sm:$0xff]
      %v1582 = vld [vmem:[#allocation2 + $0x58] sm:$0xff]
      %v1583 = vld [vmem:[#allocation2 + $0x60] sm:$0xff]
      %v1584 = vld [vmem:[#allocation2 + $0x68] sm:$0xff]
      %v1585 = vld [vmem:[#allocation2 + $0x70] sm:$0xff]
      %v1586 = vld [vmem:[#allocation2 + $0x78] sm:$0xff]
      %v1587 = vld [vmem:[#allocation2 + $0x80] sm:$0xff]
      %v1588 = vld [vmem:[#allocation2 + $0x88] sm:$0xff]
      %v1589 = vld [vmem:[#allocation2 + $0x90] sm:$0xff]
      %v1590 = vld [vmem:[#allocation2 + $0x98] sm:$0xff]
      %v1591 = vld [vmem:[#allocation2 + $0xa0] sm:$0xff]
      %v1592 = vld [vmem:[#allocation2 + $0xa8] sm:$0xff]
      %v1593 = vld [vmem:[#allocation2 + $0xb0] sm:$0xff]
      %v1594 = vld [vmem:[#allocation2 + $0xb8] sm:$0xff]
      %v1595 = vld [vmem:[#allocation2 + $0xc0] sm:$0xff]
      %v1596 = vld [vmem:[#allocation2 + $0xc8] sm:$0xff]
      %v1597 = vld [vmem:[#allocation2 + $0xd0] sm:$0xff]
      %v1598 = vld [vmem:[#allocation2 + $0xd8] sm:$0xff]
      %v1599 = vld [vmem:[#allocation2 + $0xe0] sm:$0xff]
      %v1600 = vld [vmem:[#allocation2 + $0xe8] sm:$0xff]
      %v1601 = vld [vmem:[#allocation2 + $0xf0] sm:$0xff]
      %v1602 = vld [vmem:[#allocation2 + $0xf8] sm:$0xff]
      %1603 = vset.pattern.permute.xlu0 2
      %1604 = vperm.xlu0 %1603, %v254
      %v1605 = vpop.permute.xlu0 %1604
      %1607 = vset.pattern.permute.xlu0 2
      %1608 = vperm.xlu0 %1607, %v255
      %v1609 = vpop.permute.xlu0 %1608
      %1611 = vset.pattern.permute.xlu0 2
      %1612 = vperm.xlu0 %1611, %v256
      %v1613 = vpop.permute.xlu0 %1612
      %1615 = vset.pattern.permute.xlu0 2
      %1616 = vperm.xlu0 %1615, %v257
      %v1617 = vpop.permute.xlu0 %1616
      %1619 = vset.pattern.permute.xlu0 2
      %1620 = vperm.xlu0 %1619, %v258
      %v1621 = vpop.permute.xlu0 %1620
      %1623 = vset.pattern.permute.xlu0 2
      %1624 = vperm.xlu0 %1623, %v259
      %v1625 = vpop.permute.xlu0 %1624
      %1627 = vset.pattern.permute.xlu0 2
      %1628 = vperm.xlu0 %1627, %v260
      %v1629 = vpop.permute.xlu0 %1628
      %1631 = vset.pattern.permute.xlu0 2
      %1632 = vperm.xlu0 %1631, %v261
      %v1633 = vpop.permute.xlu0 %1632
      %1635 = vset.pattern.permute.xlu0 2
      %1636 = vperm.xlu0 %1635, %v262
      %v1637 = vpop.permute.xlu0 %1636
      %1639 = vset.pattern.permute.xlu0 2
      %1640 = vperm.xlu0 %1639, %v263
      %v1641 = vpop.permute.xlu0 %1640
      %1643 = vset.pattern.permute.xlu0 2
      %1644 = vperm.xlu0 %1643, %v264
      %v1645 = vpop.permute.xlu0 %1644
      %1647 = vset.pattern.permute.xlu0 2
      %1648 = vperm.xlu0 %1647, %v265
      %v1649 = vpop.permute.xlu0 %1648
      %1651 = vset.pattern.permute.xlu0 2
      %1652 = vperm.xlu0 %1651, %v266
      %v1653 = vpop.permute.xlu0 %1652
      %1655 = vset.pattern.permute.xlu0 2
      %1656 = vperm.xlu0 %1655, %v267
      %v1657 = vpop.permute.xlu0 %1656
      %1659 = vset.pattern.permute.xlu0 2
      %1660 = vperm.xlu0 %1659, %v268
      %v1661 = vpop.permute.xlu0 %1660
      %1663 = vset.pattern.permute.xlu0 2
      %1664 = vperm.xlu0 %1663, %v269
      %v1665 = vpop.permute.xlu0 %1664
      %1667 = vset.pattern.permute.xlu0 2
      %1668 = vperm.xlu0 %1667, %v270
      %v1669 = vpop.permute.xlu0 %1668
      %1671 = vset.pattern.permute.xlu0 2
      %1672 = vperm.xlu0 %1671, %v271
      %v1673 = vpop.permute.xlu0 %1672
      %1675 = vset.pattern.permute.xlu0 2
      %1676 = vperm.xlu0 %1675, %v272
      %v1677 = vpop.permute.xlu0 %1676
      %1679 = vset.pattern.permute.xlu0 2
      %1680 = vperm.xlu0 %1679, %v273
      %v1681 = vpop.permute.xlu0 %1680
      %1683 = vset.pattern.permute.xlu0 2
      %1684 = vperm.xlu0 %1683, %v274
      %v1685 = vpop.permute.xlu0 %1684
      %1687 = vset.pattern.permute.xlu0 2
      %1688 = vperm.xlu0 %1687, %v275
      %v1689 = vpop.permute.xlu0 %1688
      %1691 = vset.pattern.permute.xlu0 2
      %1692 = vperm.xlu0 %1691, %v276
      %v1693 = vpop.permute.xlu0 %1692
      %1695 = vset.pattern.permute.xlu0 2
      %1696 = vperm.xlu0 %1695, %v277
      %v1697 = vpop.permute.xlu0 %1696
      %1699 = vset.pattern.permute.xlu0 2
      %1700 = vperm.xlu0 %1699, %v278
      %v1701 = vpop.permute.xlu0 %1700
      %1703 = vset.pattern.permute.xlu0 2
      %1704 = vperm.xlu0 %1703, %v279
      %v1705 = vpop.permute.xlu0 %1704
      %1707 = vset.pattern.permute.xlu0 2
      %1708 = vperm.xlu0 %1707, %v280
      %v1709 = vpop.permute.xlu0 %1708
      %1711 = vset.pattern.permute.xlu0 2
      %1712 = vperm.xlu0 %1711, %v281
      %v1713 = vpop.permute.xlu0 %1712
      %1715 = vset.pattern.permute.xlu0 2
      %1716 = vperm.xlu0 %1715, %v282
      %v1717 = vpop.permute.xlu0 %1716
      %1719 = vset.pattern.permute.xlu0 2
      %1720 = vperm.xlu0 %1719, %v283
      %v1721 = vpop.permute.xlu0 %1720
      %1723 = vset.pattern.permute.xlu0 2
      %1724 = vperm.xlu0 %1723, %v284
      %v1725 = vpop.permute.xlu0 %1724
      %1727 = vset.pattern.permute.xlu0 2
      %1728 = vperm.xlu0 %1727, %v285
      %v1729 = vpop.permute.xlu0 %1728
      %v1731 = vmul.f32 %v1605, %v1571
      %v1732 = vmul.f32 %v1609, %v1572
      %v1733 = vmul.f32 %v1613, %v1573
      %v1734 = vmul.f32 %v1617, %v1574
      %v1735 = vmul.f32 %v1621, %v1575
      %v1736 = vmul.f32 %v1625, %v1576
      %v1737 = vmul.f32 %v1629, %v1577
      %v1738 = vmul.f32 %v1633, %v1578
      %v1739 = vmul.f32 %v1637, %v1579
      %v1740 = vmul.f32 %v1641, %v1580
      %v1741 = vmul.f32 %v1645, %v1581
      %v1742 = vmul.f32 %v1649, %v1582
      %v1743 = vmul.f32 %v1653, %v1583
      %v1744 = vmul.f32 %v1657, %v1584
      %v1745 = vmul.f32 %v1661, %v1585
      %v1746 = vmul.f32 %v1665, %v1586
      %v1747 = vmul.f32 %v1669, %v1587
      %v1748 = vmul.f32 %v1673, %v1588
      %v1749 = vmul.f32 %v1677, %v1589
      %v1750 = vmul.f32 %v1681, %v1590
      %v1751 = vmul.f32 %v1685, %v1591
      %v1752 = vmul.f32 %v1689, %v1592
      %v1753 = vmul.f32 %v1693, %v1593
      %v1754 = vmul.f32 %v1697, %v1594
      %v1755 = vmul.f32 %v1701, %v1595
      %v1756 = vmul.f32 %v1705, %v1596
      %v1757 = vmul.f32 %v1709, %v1597
      %v1758 = vmul.f32 %v1713, %v1598
      %v1759 = vmul.f32 %v1717, %v1599
      %v1760 = vmul.f32 %v1721, %v1600
      %v1761 = vmul.f32 %v1725, %v1601
      %v1762 = vmul.f32 %v1729, %v1602
      %v1763 = vadd.f32 %v1344, %v1731
      %v1764 = vadd.f32 %v1345, %v1732
      %v1765 = vadd.f32 %v1346, %v1733
      %v1766 = vadd.f32 %v1347, %v1734
      %v1767 = vadd.f32 %v1348, %v1735
      %v1768 = vadd.f32 %v1349, %v1736
      %v1769 = vadd.f32 %v1350, %v1737
      %v1770 = vadd.f32 %v1351, %v1738
      %v1771 = vadd.f32 %v1352, %v1739
      %v1772 = vadd.f32 %v1353, %v1740
      %v1773 = vadd.f32 %v1354, %v1741
      %v1774 = vadd.f32 %v1355, %v1742
      %v1775 = vadd.f32 %v1356, %v1743
      %v1776 = vadd.f32 %v1357, %v1744
      %v1777 = vadd.f32 %v1358, %v1745
      %v1778 = vadd.f32 %v1359, %v1746
      %v1779 = vadd.f32 %v1360, %v1747
      %v1780 = vadd.f32 %v1361, %v1748
      %v1781 = vadd.f32 %v1362, %v1749
      %v1782 = vadd.f32 %v1363, %v1750
      %v1783 = vadd.f32 %v1364, %v1751
      %v1784 = vadd.f32 %v1365, %v1752
      %v1785 = vadd.f32 %v1366, %v1753
      %v1786 = vadd.f32 %v1367, %v1754
      %v1787 = vadd.f32 %v1368, %v1755
      %v1788 = vadd.f32 %v1369, %v1756
      %v1789 = vadd.f32 %v1370, %v1757
      %v1790 = vadd.f32 %v1371, %v1758
      %v1791 = vadd.f32 %v1372, %v1759
      %v1792 = vadd.f32 %v1373, %v1760
      %v1793 = vadd.f32 %v1374, %v1761
      %v1794 = vadd.f32 %v1375, %v1762
      %1795 = vst [vmem:[#allocation2 + $0x10] sm:$0xff] %v1507
      %1796 = vst [vmem:[#allocation2 + $0x18] sm:$0xff] %v1508
      %1797 = vst [vmem:[#allocation2 + $0x20] sm:$0xff] %v1509
      %1798 = vst [vmem:[#allocation2 + $0x28] sm:$0xff] %v1510
      %1799 = vst [vmem:[#allocation2 + $0x30] sm:$0xff] %v1511
      %1800 = vst [vmem:[#allocation2 + $0x38] sm:$0xff] %v1512
      %1801 = vst [vmem:[#allocation2 + $0x40] sm:$0xff] %v1513
      %1802 = vst [vmem:[#allocation2 + $0x48] sm:$0xff] %v1514
      %1803 = vst [vmem:[#allocation2 + $0x50] sm:$0xff] %v1515
      %1804 = vst [vmem:[#allocation2 + $0x58] sm:$0xff] %v1516
      %1805 = vst [vmem:[#allocation2 + $0x60] sm:$0xff] %v1517
      %1806 = vst [vmem:[#allocation2 + $0x68] sm:$0xff] %v1518
      %1807 = vst [vmem:[#allocation2 + $0x70] sm:$0xff] %v1519
      %1808 = vst [vmem:[#allocation2 + $0x78] sm:$0xff] %v1520
      %1809 = vst [vmem:[#allocation2 + $0x80] sm:$0xff] %v1521
      %1810 = vst [vmem:[#allocation2 + $0x88] sm:$0xff] %v1522
      %1811 = vst [vmem:[#allocation2 + $0x90] sm:$0xff] %v1523
      %1812 = vst [vmem:[#allocation2 + $0x98] sm:$0xff] %v1524
      %1813 = vst [vmem:[#allocation2 + $0xa0] sm:$0xff] %v1525
      %1814 = vst [vmem:[#allocation2 + $0xa8] sm:$0xff] %v1526
      %1815 = vst [vmem:[#allocation2 + $0xb0] sm:$0xff] %v1527
      %1816 = vst [vmem:[#allocation2 + $0xb8] sm:$0xff] %v1528
      %1817 = vst [vmem:[#allocation2 + $0xc0] sm:$0xff] %v1529
      %1818 = vst [vmem:[#allocation2 + $0xc8] sm:$0xff] %v1530
      %1819 = vst [vmem:[#allocation2 + $0xd0] sm:$0xff] %v1531
      %1820 = vst [vmem:[#allocation2 + $0xd8] sm:$0xff] %v1532
      %1821 = vst [vmem:[#allocation2 + $0xe0] sm:$0xff] %v1533
      %1822 = vst [vmem:[#allocation2 + $0xe8] sm:$0xff] %v1534
      %1823 = vst [vmem:[#allocation2 + $0xf0] sm:$0xff] %v1535
      %1824 = vst [vmem:[#allocation2 + $0xf8] sm:$0xff] %v1536
      %1825 = vst [vmem:[#allocation2 + $0x100] sm:$0xff] %v1537
      %1826 = vst [vmem:[#allocation2 + $0x108] sm:$0xff] %v1538
      %v1827 = vld [vmem:[#allocation2 + $0x20] sm:$0xff]
      %v1828 = vld [vmem:[#allocation2 + $0x28] sm:$0xff]
      %v1829 = vld [vmem:[#allocation2 + $0x30] sm:$0xff]
      %v1830 = vld [vmem:[#allocation2 + $0x38] sm:$0xff]
      %v1831 = vld [vmem:[#allocation2 + $0x40] sm:$0xff]
      %v1832 = vld [vmem:[#allocation2 + $0x48] sm:$0xff]
      %v1833 = vld [vmem:[#allocation2 + $0x50] sm:$0xff]
      %v1834 = vld [vmem:[#allocation2 + $0x58] sm:$0xff]
      %v1835 = vld [vmem:[#allocation2 + $0x60] sm:$0xff]
      %v1836 = vld [vmem:[#allocation2 + $0x68] sm:$0xff]
      %v1837 = vld [vmem:[#allocation2 + $0x70] sm:$0xff]
      %v1838 = vld [vmem:[#allocation2 + $0x78] sm:$0xff]
      %v1839 = vld [vmem:[#allocation2 + $0x80] sm:$0xff]
      %v1840 = vld [vmem:[#allocation2 + $0x88] sm:$0xff]
      %v1841 = vld [vmem:[#allocation2 + $0x90] sm:$0xff]
      %v1842 = vld [vmem:[#allocation2 + $0x98] sm:$0xff]
      %v1843 = vld [vmem:[#allocation2 + $0xa0] sm:$0xff]
      %v1844 = vld [vmem:[#allocation2 + $0xa8] sm:$0xff]
      %v1845 = vld [vmem:[#allocation2 + $0xb0] sm:$0xff]
      %v1846 = vld [vmem:[#allocation2 + $0xb8] sm:$0xff]
      %v1847 = vld [vmem:[#allocation2 + $0xc0] sm:$0xff]
      %v1848 = vld [vmem:[#allocation2 + $0xc8] sm:$0xff]
      %v1849 = vld [vmem:[#allocation2 + $0xd0] sm:$0xff]
      %v1850 = vld [vmem:[#allocation2 + $0xd8] sm:$0xff]
      %v1851 = vld [vmem:[#allocation2 + $0xe0] sm:$0xff]
      %v1852 = vld [vmem:[#allocation2 + $0xe8] sm:$0xff]
      %v1853 = vld [vmem:[#allocation2 + $0xf0] sm:$0xff]
      %v1854 = vld [vmem:[#allocation2 + $0xf8] sm:$0xff]
      %v1855 = vld [vmem:[#allocation2 + $0x100] sm:$0xff]
      %v1856 = vld [vmem:[#allocation2 + $0x108] sm:$0xff]
      %v1857 = vld [vmem:[#allocation2 + $0x110] sm:$0xff]
      %v1858 = vld [vmem:[#allocation2 + $0x118] sm:$0xff]
      %1859 = vset.pattern.permute.xlu0 3
      %1860 = vperm.xlu0 %1859, %v254
      %v1861 = vpop.permute.xlu0 %1860
      %1863 = vset.pattern.permute.xlu0 3
      %1864 = vperm.xlu0 %1863, %v255
      %v1865 = vpop.permute.xlu0 %1864
      %1867 = vset.pattern.permute.xlu0 3
      %1868 = vperm.xlu0 %1867, %v256
      %v1869 = vpop.permute.xlu0 %1868
      %1871 = vset.pattern.permute.xlu0 3
      %1872 = vperm.xlu0 %1871, %v257
      %v1873 = vpop.permute.xlu0 %1872
      %1875 = vset.pattern.permute.xlu0 3
      %1876 = vperm.xlu0 %1875, %v258
      %v1877 = vpop.permute.xlu0 %1876
      %1879 = vset.pattern.permute.xlu0 3
      %1880 = vperm.xlu0 %1879, %v259
      %v1881 = vpop.permute.xlu0 %1880
      %1883 = vset.pattern.permute.xlu0 3
      %1884 = vperm.xlu0 %1883, %v260
      %v1885 = vpop.permute.xlu0 %1884
      %1887 = vset.pattern.permute.xlu0 3
      %1888 = vperm.xlu0 %1887, %v261
      %v1889 = vpop.permute.xlu0 %1888
      %1891 = vset.pattern.permute.xlu0 3
      %1892 = vperm.xlu0 %1891, %v262
      %v1893 = vpop.permute.xlu0 %1892
      %1895 = vset.pattern.permute.xlu0 3
      %1896 = vperm.xlu0 %1895, %v263
      %v1897 = vpop.permute.xlu0 %1896
      %1899 = vset.pattern.permute.xlu0 3
      %1900 = vperm.xlu0 %1899, %v264
      %v1901 = vpop.permute.xlu0 %1900
      %1903 = vset.pattern.permute.xlu0 3
      %1904 = vperm.xlu0 %1903, %v265
      %v1905 = vpop.permute.xlu0 %1904
      %1907 = vset.pattern.permute.xlu0 3
      %1908 = vperm.xlu0 %1907, %v266
      %v1909 = vpop.permute.xlu0 %1908
      %1911 = vset.pattern.permute.xlu0 3
      %1912 = vperm.xlu0 %1911, %v267
      %v1913 = vpop.permute.xlu0 %1912
      %1915 = vset.pattern.permute.xlu0 3
      %1916 = vperm.xlu0 %1915, %v268
      %v1917 = vpop.permute.xlu0 %1916
      %1919 = vset.pattern.permute.xlu0 3
      %1920 = vperm.xlu0 %1919, %v269
      %v1921 = vpop.permute.xlu0 %1920
      %1923 = vset.pattern.permute.xlu0 3
      %1924 = vperm.xlu0 %1923, %v270
      %v1925 = vpop.permute.xlu0 %1924
      %1927 = vset.pattern.permute.xlu0 3
      %1928 = vperm.xlu0 %1927, %v271
      %v1929 = vpop.permute.xlu0 %1928
      %1931 = vset.pattern.permute.xlu0 3
      %1932 = vperm.xlu0 %1931, %v272
      %v1933 = vpop.permute.xlu0 %1932
      %1935 = vset.pattern.permute.xlu0 3
      %1936 = vperm.xlu0 %1935, %v273
      %v1937 = vpop.permute.xlu0 %1936
      %1939 = vset.pattern.permute.xlu0 3
      %1940 = vperm.xlu0 %1939, %v274
      %v1941 = vpop.permute.xlu0 %1940
      %1943 = vset.pattern.permute.xlu0 3
      %1944 = vperm.xlu0 %1943, %v275
      %v1945 = vpop.permute.xlu0 %1944
      %1947 = vset.pattern.permute.xlu0 3
      %1948 = vperm.xlu0 %1947, %v276
      %v1949 = vpop.permute.xlu0 %1948
      %1951 = vset.pattern.permute.xlu0 3
      %1952 = vperm.xlu0 %1951, %v277
      %v1953 = vpop.permute.xlu0 %1952
      %1955 = vset.pattern.permute.xlu0 3
      %1956 = vperm.xlu0 %1955, %v278
      %v1957 = vpop.permute.xlu0 %1956
      %1959 = vset.pattern.permute.xlu0 3
      %1960 = vperm.xlu0 %1959, %v279
      %v1961 = vpop.permute.xlu0 %1960
      %1963 = vset.pattern.permute.xlu0 3
      %1964 = vperm.xlu0 %1963, %v280
      %v1965 = vpop.permute.xlu0 %1964
      %1967 = vset.pattern.permute.xlu0 3
      %1968 = vperm.xlu0 %1967, %v281
      %v1969 = vpop.permute.xlu0 %1968
      %1971 = vset.pattern.permute.xlu0 3
      %1972 = vperm.xlu0 %1971, %v282
      %v1973 = vpop.permute.xlu0 %1972
      %1975 = vset.pattern.permute.xlu0 3
      %1976 = vperm.xlu0 %1975, %v283
      %v1977 = vpop.permute.xlu0 %1976
      %1979 = vset.pattern.permute.xlu0 3
      %1980 = vperm.xlu0 %1979, %v284
      %v1981 = vpop.permute.xlu0 %1980
      %1983 = vset.pattern.permute.xlu0 3
      %1984 = vperm.xlu0 %1983, %v285
      %v1985 = vpop.permute.xlu0 %1984
      %v1987 = vmul.f32 %v1861, %v1827
      %v1988 = vmul.f32 %v1865, %v1828
      %v1989 = vmul.f32 %v1869, %v1829
      %v1990 = vmul.f32 %v1873, %v1830
      %v1991 = vmul.f32 %v1877, %v1831
      %v1992 = vmul.f32 %v1881, %v1832
      %v1993 = vmul.f32 %v1885, %v1833
      %v1994 = vmul.f32 %v1889, %v1834
      %v1995 = vmul.f32 %v1893, %v1835
      %v1996 = vmul.f32 %v1897, %v1836
      %v1997 = vmul.f32 %v1901, %v1837
      %v1998 = vmul.f32 %v1905, %v1838
      %v1999 = vmul.f32 %v1909, %v1839
      %v2000 = vmul.f32 %v1913, %v1840
      %v2001 = vmul.f32 %v1917, %v1841
      %v2002 = vmul.f32 %v1921, %v1842
      %v2003 = vmul.f32 %v1925, %v1843
      %v2004 = vmul.f32 %v1929, %v1844
      %v2005 = vmul.f32 %v1933, %v1845
      %v2006 = vmul.f32 %v1937, %v1846
      %v2007 = vmul.f32 %v1941, %v1847
      %v2008 = vmul.f32 %v1945, %v1848
      %v2009 = vmul.f32 %v1949, %v1849
      %v2010 = vmul.f32 %v1953, %v1850
      %v2011 = vmul.f32 %v1957, %v1851
      %v2012 = vmul.f32 %v1961, %v1852
      %v2013 = vmul.f32 %v1965, %v1853
      %v2014 = vmul.f32 %v1969, %v1854
      %v2015 = vmul.f32 %v1973, %v1855
      %v2016 = vmul.f32 %v1977, %v1856
      %v2017 = vmul.f32 %v1981, %v1857
      %v2018 = vmul.f32 %v1985, %v1858
      %v2019 = vadd.f32 %v1763, %v1987
      %v2020 = vadd.f32 %v1764, %v1988
      %v2021 = vadd.f32 %v1765, %v1989
      %v2022 = vadd.f32 %v1766, %v1990
      %v2023 = vadd.f32 %v1767, %v1991
      %v2024 = vadd.f32 %v1768, %v1992
      %v2025 = vadd.f32 %v1769, %v1993
      %v2026 = vadd.f32 %v1770, %v1994
      %v2027 = vadd.f32 %v1771, %v1995
      %v2028 = vadd.f32 %v1772, %v1996
      %v2029 = vadd.f32 %v1773, %v1997
      %v2030 = vadd.f32 %v1774, %v1998
      %v2031 = vadd.f32 %v1775, %v1999
      %v2032 = vadd.f32 %v1776, %v2000
      %v2033 = vadd.f32 %v1777, %v2001
      %v2034 = vadd.f32 %v1778, %v2002
      %v2035 = vadd.f32 %v1779, %v2003
      %v2036 = vadd.f32 %v1780, %v2004
      %v2037 = vadd.f32 %v1781, %v2005
      %v2038 = vadd.f32 %v1782, %v2006
      %v2039 = vadd.f32 %v1783, %v2007
      %v2040 = vadd.f32 %v1784, %v2008
      %v2041 = vadd.f32 %v1785, %v2009
      %v2042 = vadd.f32 %v1786, %v2010
      %v2043 = vadd.f32 %v1787, %v2011
      %v2044 = vadd.f32 %v1788, %v2012
      %v2045 = vadd.f32 %v1789, %v2013
      %v2046 = vadd.f32 %v1790, %v2014
      %v2047 = vadd.f32 %v1791, %v2015
      %v2048 = vadd.f32 %v1792, %v2016
      %v2049 = vadd.f32 %v1793, %v2017
      %v2050 = vadd.f32 %v1794, %v2018
      %v2051 = vperm.slane %v253, 2
      %v2052 = vadd.f32 %v2019, %v2051
      %v2053 = vadd.f32 %v2020, %v2051
      %v2054 = vadd.f32 %v2021, %v2051
      %v2055 = vadd.f32 %v2022, %v2051
      %v2056 = vadd.f32 %v2023, %v2051
      %v2057 = vadd.f32 %v2024, %v2051
      %v2058 = vadd.f32 %v2025, %v2051
      %v2059 = vadd.f32 %v2026, %v2051
      %v2060 = vadd.f32 %v2027, %v2051
      %v2061 = vadd.f32 %v2028, %v2051
      %v2062 = vadd.f32 %v2029, %v2051
      %v2063 = vadd.f32 %v2030, %v2051
      %v2064 = vadd.f32 %v2031, %v2051
      %v2065 = vadd.f32 %v2032, %v2051
      %v2066 = vadd.f32 %v2033, %v2051
      %v2067 = vadd.f32 %v2034, %v2051
      %v2068 = vadd.f32 %v2035, %v2051
      %v2069 = vadd.f32 %v2036, %v2051
      %v2070 = vadd.f32 %v2037, %v2051
      %v2071 = vadd.f32 %v2038, %v2051
      %v2072 = vadd.f32 %v2039, %v2051
      %v2073 = vadd.f32 %v2040, %v2051
      %v2074 = vadd.f32 %v2041, %v2051
      %v2075 = vadd.f32 %v2042, %v2051
      %v2076 = vadd.f32 %v2043, %v2051
      %v2077 = vadd.f32 %v2044, %v2051
      %v2078 = vadd.f32 %v2045, %v2051
      %v2079 = vadd.f32 %v2046, %v2051
      %v2080 = vadd.f32 %v2047, %v2051
      %v2081 = vadd.f32 %v2048, %v2051
      %v2082 = vadd.f32 %v2049, %v2051
      %v2083 = vadd.f32 %v2050, %v2051
      %v2084 = vmax.f32 %v2052, 0.0
      %v2085 = vmax.f32 %v2053, 0.0
      %v2086 = vmax.f32 %v2054, 0.0
      %v2087 = vmax.f32 %v2055, 0.0
      %v2088 = vmax.f32 %v2056, 0.0
      %v2089 = vmax.f32 %v2057, 0.0
      %v2090 = vmax.f32 %v2058, 0.0
      %v2091 = vmax.f32 %v2059, 0.0
      %v2092 = vmax.f32 %v2060, 0.0
      %v2093 = vmax.f32 %v2061, 0.0
      %v2094 = vmax.f32 %v2062, 0.0
      %v2095 = vmax.f32 %v2063, 0.0
      %v2096 = vmax.f32 %v2064, 0.0
      %v2097 = vmax.f32 %v2065, 0.0
      %v2098 = vmax.f32 %v2066, 0.0
      %v2099 = vmax.f32 %v2067, 0.0
      %v2100 = vmax.f32 %v2068, 0.0
      %v2101 = vmax.f32 %v2069, 0.0
      %v2102 = vmax.f32 %v2070, 0.0
      %v2103 = vmax.f32 %v2071, 0.0
      %v2104 = vmax.f32 %v2072, 0.0
      %v2105 = vmax.f32 %v2073, 0.0
      %v2106 = vmax.f32 %v2074, 0.0
      %v2107 = vmax.f32 %v2075, 0.0
      %v2108 = vmax.f32 %v2076, 0.0
      %v2109 = vmax.f32 %v2077, 0.0
      %v2110 = vmax.f32 %v2078, 0.0
      %v2111 = vmax.f32 %v2079, 0.0
      %v2112 = vmax.f32 %v2080, 0.0
      %v2113 = vmax.f32 %v2081, 0.0
      %v2114 = vmax.f32 %v2082, 0.0
      %v2115 = vmax.f32 %v2083, 0.0
      %v2116 = vmin.f32 %v2084, 6.0
      %v2117 = vmin.f32 %v2085, 6.0
      %v2118 = vmin.f32 %v2086, 6.0
      %v2119 = vmin.f32 %v2087, 6.0
      %v2120 = vmin.f32 %v2088, 6.0
      %v2121 = vmin.f32 %v2089, 6.0
      %v2122 = vmin.f32 %v2090, 6.0
      %v2123 = vmin.f32 %v2091, 6.0
      %v2124 = vmin.f32 %v2092, 6.0
      %v2125 = vmin.f32 %v2093, 6.0
      %v2126 = vmin.f32 %v2094, 6.0
      %v2127 = vmin.f32 %v2095, 6.0
      %v2128 = vmin.f32 %v2096, 6.0
      %v2129 = vmin.f32 %v2097, 6.0
      %v2130 = vmin.f32 %v2098, 6.0
      %v2131 = vmin.f32 %v2099, 6.0
      %v2132 = vmin.f32 %v2100, 6.0
      %v2133 = vmin.f32 %v2101, 6.0
      %v2134 = vmin.f32 %v2102, 6.0
      %v2135 = vmin.f32 %v2103, 6.0
      %v2136 = vmin.f32 %v2104, 6.0
      %v2137 = vmin.f32 %v2105, 6.0
      %v2138 = vmin.f32 %v2106, 6.0
      %v2139 = vmin.f32 %v2107, 6.0
      %v2140 = vmin.f32 %v2108, 6.0
      %v2141 = vmin.f32 %v2109, 6.0
      %v2142 = vmin.f32 %v2110, 6.0
      %v2143 = vmin.f32 %v2111, 6.0
      %v2144 = vmin.f32 %v2112, 6.0
      %v2145 = vmin.f32 %v2113, 6.0
      %v2146 = vmin.f32 %v2114, 6.0
      %v2147 = vmin.f32 %v2115, 6.0
      %v2148 = vpack.c.bf16 %v2117, %v2116
      %v2149 = vpack.c.bf16 %v2119, %v2118
      %v2150 = vpack.c.bf16 %v2121, %v2120
      %v2151 = vpack.c.bf16 %v2123, %v2122
      %v2152 = vpack.c.bf16 %v2125, %v2124
      %v2153 = vpack.c.bf16 %v2127, %v2126
      %v2154 = vpack.c.bf16 %v2129, %v2128
      %v2155 = vpack.c.bf16 %v2131, %v2130
      %v2156 = vpack.c.bf16 %v2133, %v2132
      %v2157 = vpack.c.bf16 %v2135, %v2134
      %v2158 = vpack.c.bf16 %v2137, %v2136
      %v2159 = vpack.c.bf16 %v2139, %v2138
      %v2160 = vpack.c.bf16 %v2141, %v2140
      %v2161 = vpack.c.bf16 %v2143, %v2142
      %v2162 = vpack.c.bf16 %v2145, %v2144
      %v2163 = vpack.c.bf16 %v2147, %v2146
      %v2164 = vld [vmem:[%s4] sm:$0xf]
      %v2165 = vld [vmem:[%s4 + $0x4] sm:$0xf]
      %v2166 = vld [vmem:[%s4 + $0x8] sm:$0xf]
      %v2167 = vld [vmem:[%s4 + $0xc] sm:$0xf]
      %v2168 = vld [vmem:[%s4 + $0x10] sm:$0xf]
      %v2169 = vld [vmem:[%s4 + $0x14] sm:$0xf]
      %v2170 = vld [vmem:[%s4 + $0x18] sm:$0xf]
      %v2171 = vld [vmem:[%s4 + $0x1c] sm:$0xf]
      %v2172 = vld [vmem:[%s4 + $0x20] sm:$0xf]
      %v2173 = vld [vmem:[%s4 + $0x24] sm:$0xf]
      %v2174 = vld [vmem:[%s4 + $0x28] sm:$0xf]
      %v2175 = vld [vmem:[%s4 + $0x2c] sm:$0xf]
      %v2176 = vld [vmem:[%s4 + $0x30] sm:$0xf]
      %v2177 = vld [vmem:[%s4 + $0x34] sm:$0xf]
      %v2178 = vld [vmem:[%s4 + $0x38] sm:$0xf]
      %v2179 = vld [vmem:[%s4 + $0x3c] sm:$0xf]
      %v2180 = vld [vmem:[%s5] sm:$0x1]
      %v2182 = vperm.slane %v2180, 0
      %v2200 = vunpack.c.l.b16 %v2164
      %v2201 = vunpack.c.l.b16 %v2165
      %v2202 = vunpack.c.l.b16 %v2166
      %v2203 = vunpack.c.l.b16 %v2167
      %v2204 = vunpack.c.l.b16 %v2168
      %v2205 = vunpack.c.l.b16 %v2169
      %v2206 = vunpack.c.l.b16 %v2170
      %v2207 = vunpack.c.l.b16 %v2171
      %v2208 = vunpack.c.l.b16 %v2172
      %v2209 = vunpack.c.l.b16 %v2173
      %v2210 = vunpack.c.l.b16 %v2174
      %v2211 = vunpack.c.l.b16 %v2175
      %v2212 = vunpack.c.l.b16 %v2176
      %v2213 = vunpack.c.l.b16 %v2177
      %v2214 = vunpack.c.l.b16 %v2178
      %v2215 = vunpack.c.l.b16 %v2179
      %v2216 = vpack.c.b16 %v2201, %v2200
      %v2217 = vpack.c.b16 %v2203, %v2202
      %v2218 = vpack.c.b16 %v2205, %v2204
      %v2219 = vpack.c.b16 %v2207, %v2206
      %v2220 = vpack.c.b16 %v2209, %v2208
      %v2221 = vpack.c.b16 %v2211, %v2210
      %v2222 = vpack.c.b16 %v2213, %v2212
      %v2223 = vpack.c.b16 %v2215, %v2214
      %2232 = vmatpush.bf16.msra.mxu0 %v2223
      %2233 = vmatpush.bf16.msra.mxu0 %v2222
      %2234 = vmatpush.bf16.msra.mxu0 %v2221
      %2235 = vmatpush.bf16.msra.mxu0 %v2220
      %2236 = vmatpush.bf16.msra.mxu0 %v2219
      %2237 = vmatpush.bf16.msra.mxu0 %v2218
      %2238 = vmatpush.bf16.msra.mxu0 %v2217
      %2239 = vmatpush.bf16.msra.mxu0 %v2216
      %2240 = vmatmul.bf16.gmra.mxu0 %v2148
      %v2241 = vpop.f32.mrf.mxu0
      %v2242 = vadd.f32 %v2182, %v2241
      %v2243 = vpop.f32.mrf.mxu0
      %v2244 = vadd.f32 %v2182, %v2243
      %2245 = vmatmul.bf16.gmra.mxu0 %v2149
      %v2246 = vpop.f32.mrf.mxu0
      %v2247 = vadd.f32 %v2182, %v2246
      %v2248 = vpop.f32.mrf.mxu0
      %v2249 = vadd.f32 %v2182, %v2248
      %2250 = vmatmul.bf16.gmra.mxu0 %v2150
      %v2251 = vpop.f32.mrf.mxu0
      %v2252 = vadd.f32 %v2182, %v2251
      %v2253 = vpop.f32.mrf.mxu0
      %v2254 = vadd.f32 %v2182, %v2253
      %2255 = vmatmul.bf16.gmra.mxu0 %v2151
      %v2256 = vpop.f32.mrf.mxu0
      %v2257 = vadd.f32 %v2182, %v2256
      %v2258 = vpop.f32.mrf.mxu0
      %v2259 = vadd.f32 %v2182, %v2258
      %2260 = vmatmul.bf16.gmra.mxu0 %v2152
      %v2261 = vpop.f32.mrf.mxu0
      %v2262 = vadd.f32 %v2182, %v2261
      %v2263 = vpop.f32.mrf.mxu0
      %v2264 = vadd.f32 %v2182, %v2263
      %2265 = vmatmul.bf16.gmra.mxu0 %v2153
      %v2266 = vpop.f32.mrf.mxu0
      %v2267 = vadd.f32 %v2182, %v2266
      %v2268 = vpop.f32.mrf.mxu0
      %v2269 = vadd.f32 %v2182, %v2268
      %2270 = vmatmul.bf16.gmra.mxu0 %v2154
      %v2271 = vpop.f32.mrf.mxu0
      %v2272 = vadd.f32 %v2182, %v2271
      %v2273 = vpop.f32.mrf.mxu0
      %v2274 = vadd.f32 %v2182, %v2273
      %2275 = vmatmul.bf16.gmra.mxu0 %v2155
      %v2276 = vpop.f32.mrf.mxu0
      %v2277 = vadd.f32 %v2182, %v2276
      %v2278 = vpop.f32.mrf.mxu0
      %v2279 = vadd.f32 %v2182, %v2278
      %2280 = vmatmul.bf16.gmra.mxu0 %v2156
      %v2281 = vpop.f32.mrf.mxu0
      %v2282 = vadd.f32 %v2182, %v2281
      %v2283 = vpop.f32.mrf.mxu0
      %v2284 = vadd.f32 %v2182, %v2283
      %2285 = vmatmul.bf16.gmra.mxu0 %v2157
      %v2286 = vpop.f32.mrf.mxu0
      %v2287 = vadd.f32 %v2182, %v2286
      %v2288 = vpop.f32.mrf.mxu0
      %v2289 = vadd.f32 %v2182, %v2288
      %2290 = vmatmul.bf16.gmra.mxu0 %v2158
      %v2291 = vpop.f32.mrf.mxu0
      %v2292 = vadd.f32 %v2182, %v2291
      %v2293 = vpop.f32.mrf.mxu0
      %v2294 = vadd.f32 %v2182, %v2293
      %2295 = vmatmul.bf16.gmra.mxu0 %v2159
      %v2296 = vpop.f32.mrf.mxu0
      %v2297 = vadd.f32 %v2182, %v2296
      %v2298 = vpop.f32.mrf.mxu0
      %v2299 = vadd.f32 %v2182, %v2298
      %2300 = vmatmul.bf16.gmra.mxu0 %v2160
      %v2301 = vpop.f32.mrf.mxu0
      %v2302 = vadd.f32 %v2182, %v2301
      %v2303 = vpop.f32.mrf.mxu0
      %v2304 = vadd.f32 %v2182, %v2303
      %2305 = vmatmul.bf16.gmra.mxu0 %v2161
      %v2306 = vpop.f32.mrf.mxu0
      %v2307 = vadd.f32 %v2182, %v2306
      %v2308 = vpop.f32.mrf.mxu0
      %v2309 = vadd.f32 %v2182, %v2308
      %2310 = vmatmul.bf16.gmra.mxu0 %v2162
      %v2311 = vpop.f32.mrf.mxu0
      %v2312 = vadd.f32 %v2182, %v2311
      %v2313 = vpop.f32.mrf.mxu0
      %v2314 = vadd.f32 %v2182, %v2313
      %2315 = vmatmul.bf16.gmra.mxu0 %v2163
      %v2316 = vpop.f32.mrf.mxu0
      %v2317 = vadd.f32 %v2182, %v2316
      %v2318 = vpop.f32.mrf.mxu0
      %v2319 = vadd.f32 %v2182, %v2318
      %2320 = vdwg.mxu0
      %v2321 = vmax.f32 %v2242, 0.0
      %v2322 = vmax.f32 %v2244, 0.0
      %v2323 = vmax.f32 %v2247, 0.0
      %v2324 = vmax.f32 %v2249, 0.0
      %v2325 = vmax.f32 %v2252, 0.0
      %v2326 = vmax.f32 %v2254, 0.0
      %v2327 = vmax.f32 %v2257, 0.0
      %v2328 = vmax.f32 %v2259, 0.0
      %v2329 = vmax.f32 %v2262, 0.0
      %v2330 = vmax.f32 %v2264, 0.0
      %v2331 = vmax.f32 %v2267, 0.0
      %v2332 = vmax.f32 %v2269, 0.0
      %v2333 = vmax.f32 %v2272, 0.0
      %v2334 = vmax.f32 %v2274, 0.0
      %v2335 = vmax.f32 %v2277, 0.0
      %v2336 = vmax.f32 %v2279, 0.0
      %v2337 = vmax.f32 %v2282, 0.0
      %v2338 = vmax.f32 %v2284, 0.0
      %v2339 = vmax.f32 %v2287, 0.0
      %v2340 = vmax.f32 %v2289, 0.0
      %v2341 = vmax.f32 %v2292, 0.0
      %v2342 = vmax.f32 %v2294, 0.0
      %v2343 = vmax.f32 %v2297, 0.0
      %v2344 = vmax.f32 %v2299, 0.0
      %v2345 = vmax.f32 %v2302, 0.0
      %v2346 = vmax.f32 %v2304, 0.0
      %v2347 = vmax.f32 %v2307, 0.0
      %v2348 = vmax.f32 %v2309, 0.0
      %v2349 = vmax.f32 %v2312, 0.0
      %v2350 = vmax.f32 %v2314, 0.0
      %v2351 = vmax.f32 %v2317, 0.0
      %v2352 = vmax.f32 %v2319, 0.0
      %v2353 = vmin.f32 %v2321, 6.0
      %v2354 = vmin.f32 %v2322, 6.0
      %v2355 = vmin.f32 %v2323, 6.0
      %v2356 = vmin.f32 %v2324, 6.0
      %v2357 = vmin.f32 %v2325, 6.0
      %v2358 = vmin.f32 %v2326, 6.0
      %v2359 = vmin.f32 %v2327, 6.0
      %v2360 = vmin.f32 %v2328, 6.0
      %v2361 = vmin.f32 %v2329, 6.0
      %v2362 = vmin.f32 %v2330, 6.0
      %v2363 = vmin.f32 %v2331, 6.0
      %v2364 = vmin.f32 %v2332, 6.0
      %v2365 = vmin.f32 %v2333, 6.0
      %v2366 = vmin.f32 %v2334, 6.0
      %v2367 = vmin.f32 %v2335, 6.0
      %v2368 = vmin.f32 %v2336, 6.0
      %v2369 = vmin.f32 %v2337, 6.0
      %v2370 = vmin.f32 %v2338, 6.0
      %v2371 = vmin.f32 %v2339, 6.0
      %v2372 = vmin.f32 %v2340, 6.0
      %v2373 = vmin.f32 %v2341, 6.0
      %v2374 = vmin.f32 %v2342, 6.0
      %v2375 = vmin.f32 %v2343, 6.0
      %v2376 = vmin.f32 %v2344, 6.0
      %v2377 = vmin.f32 %v2345, 6.0
      %v2378 = vmin.f32 %v2346, 6.0
      %v2379 = vmin.f32 %v2347, 6.0
      %v2380 = vmin.f32 %v2348, 6.0
      %v2381 = vmin.f32 %v2349, 6.0
      %v2382 = vmin.f32 %v2350, 6.0
      %v2383 = vmin.f32 %v2351, 6.0
      %v2384 = vmin.f32 %v2352, 6.0
      %vm2385 = vcmask 261120
      %2386 = vst.msk [vmem:[%s251] sm:$0xff] %vm2385, %v2353
      %2387 = vst.msk [vmem:[%s251 + $0x8] sm:$0xff] %vm2385, %v2354
      %2388 = vst.msk [vmem:[%s251 + $0x10] sm:$0xff] %vm2385, %v2355
      %2389 = vst.msk [vmem:[%s251 + $0x18] sm:$0xff] %vm2385, %v2356
      %2390 = vst.msk [vmem:[%s251 + $0x20] sm:$0xff] %vm2385, %v2357
      %2391 = vst.msk [vmem:[%s251 + $0x28] sm:$0xff] %vm2385, %v2358
      %2392 = vst.msk [vmem:[%s251 + $0x30] sm:$0xff] %vm2385, %v2359
      %2393 = vst.msk [vmem:[%s251 + $0x38] sm:$0xff] %vm2385, %v2360
      %2394 = vst.msk [vmem:[%s251 + $0x40] sm:$0xff] %vm2385, %v2361
      %2395 = vst.msk [vmem:[%s251 + $0x48] sm:$0xff] %vm2385, %v2362
      %2396 = vst.msk [vmem:[%s251 + $0x50] sm:$0xff] %vm2385, %v2363
      %2397 = vst.msk [vmem:[%s251 + $0x58] sm:$0xff] %vm2385, %v2364
      %2398 = vst.msk [vmem:[%s251 + $0x60] sm:$0xff] %vm2385, %v2365
      %2399 = vst.msk [vmem:[%s251 + $0x68] sm:$0xff] %vm2385, %v2366
      %2400 = vst.msk [vmem:[%s251 + $0x70] sm:$0xff] %vm2385, %v2367
      %2401 = vst.msk [vmem:[%s251 + $0x78] sm:$0xff] %vm2385, %v2368
      %2402 = vst.msk [vmem:[%s251 + $0x80] sm:$0xff] %vm2385, %v2369
      %2403 = vst.msk [vmem:[%s251 + $0x88] sm:$0xff] %vm2385, %v2370
      %2404 = vst.msk [vmem:[%s251 + $0x90] sm:$0xff] %vm2385, %v2371
      %2405 = vst.msk [vmem:[%s251 + $0x98] sm:$0xff] %vm2385, %v2372
      %2406 = vst.msk [vmem:[%s251 + $0xa0] sm:$0xff] %vm2385, %v2373
      %2407 = vst.msk [vmem:[%s251 + $0xa8] sm:$0xff] %vm2385, %v2374
      %2408 = vst.msk [vmem:[%s251 + $0xb0] sm:$0xff] %vm2385, %v2375
      %2409 = vst.msk [vmem:[%s251 + $0xb8] sm:$0xff] %vm2385, %v2376
      %2410 = vst.msk [vmem:[%s251 + $0xc0] sm:$0xff] %vm2385, %v2377
      %2411 = vst.msk [vmem:[%s251 + $0xc8] sm:$0xff] %vm2385, %v2378
      %2412 = vst.msk [vmem:[%s251 + $0xd0] sm:$0xff] %vm2385, %v2379
      %2413 = vst.msk [vmem:[%s251 + $0xd8] sm:$0xff] %vm2385, %v2380
      %2414 = vst.msk [vmem:[%s251 + $0xe0] sm:$0xff] %vm2385, %v2381
      %2415 = vst.msk [vmem:[%s251 + $0xe8] sm:$0xff] %vm2385, %v2382
      %2416 = vst.msk [vmem:[%s251 + $0xf0] sm:$0xff] %vm2385, %v2383
      %2417 = vst.msk [vmem:[%s251 + $0xf8] sm:$0xff] %vm2385, %v2384
      %p2418 = scmp.lt.s32.totalorder %s17, 1
      %s2419 = scalar_select %p2418, %s17, 1
      %s2420 = smul.addr %s2419, 32
      %s2421 = smul.addr %s2420, 8
      %s2422 = scalar_lea.vmem %s6, %s2421
      // Predicated region
      $region45: #{dense_layer_forward.1} parent=43 // pred_check
        %p2423 = pneg %p166
      $region46: #{dense_layer_forward.1} parent=43 // pred_check_branch
        %2425 = sbr.rel (%p2423) target = $region48
      $region47: #{dense_layer_forward.1} parent=43 // pred_region
        _
      $region48: #{dense_layer_forward.1} parent=43 // pred_fallthru
        _
    $region44: #{dense_layer_forward.1} parent=5 // pred_fallthru
      _
    %p2426 = scmp.le.s32.totalorder 2, %s12
    // Predicated region
    $region49: #{dense_layer_forward.1} parent=5 // pred_check
      %p2427 = pneg %p2426
    $region50: #{dense_layer_forward.1} parent=5 // pred_check_branch
      %2429 = sbr.rel (%p2427) target = $region52
    $region51: #{dense_layer_forward.1} parent=5 // pred_region
      %s2430 = ssub.s32 %s12, 2
      // Predicated region
      $region53: #{dense_layer_forward.1} parent=51 // pred_check
        %p2431 = pneg %p172
      $region54: #{dense_layer_forward.1} parent=51 // pred_check_branch
        %2433 = sbr.rel (%p2431) target = $region56
      $region55: #{dense_layer_forward.1} parent=51 // pred_region
        %p2434 = scmp.lt.s32.totalorder %s18, 1
        %s2435 = scalar_select %p2434, %s18, 1
        %s2436 = smul.addr %s2435, 32
        %s2437 = smul.addr %s2436, 8
        %s2438 = scalar_lea.vmem %s6, %s2437
      $region56: #{dense_layer_forward.1} parent=51 // pred_fallthru
        _
    $region52: #{dense_layer_forward.1} parent=5 // pred_fallthru
      _
  $region6: #{dense_layer_forward.1} parent=0 // loop_footer
    %s16 = sadd.s32 1, %s12
  $region7: #{dense_layer_forward.1} parent=0 // loop_footer_branch
    %11 = sbr.rel target = $region3
  $region8: #{dense_layer_forward.1} parent=0 // loop_exit
    _

</llo_original>
